<compile_context>
chip_gen: v6e
topology: v6e:2x2x1
jax: 0.10.0
libtpu: 0.0.40
codegen_flags: <defaults>
</compile_context>

<pallas_src>
import functools

import jax
import jax.numpy as jnp
from jax import lax
from jax.experimental import pallas as pl
from jax.experimental.pallas import tpu as pltpu

_LANE = 128


def _round_up(x, m):
    return (x + m - 1) // m * m


def _vmem_budget_and_limit():
    """Generation-aware VMEM budget (v5e/v6e: 128 MiB, v7x: 64 MiB per TC)."""
    cap = None
    try:
        cap = int(getattr(pltpu.get_tpu_info(), "vmem_capacity_bytes", 0)) or None
    except Exception:
        cap = None
    if cap is None:
        cap = 64 * 1024 * 1024                      # conservative default (v7x)
    limit = min(int(cap * 0.85), cap - 12 * 1024 * 1024)
    limit = max(limit, 32 * 1024 * 1024)
    budget = int(limit * 0.55)
    return budget, limit


def _pick_tile_rows(H, W_p, C_p, Cmid_p, *, in_b, out_b, cdt_b, mid_b, budget):
    """Largest divisor of H whose per-step VMEM estimate fits the budget."""
    best = 1
    for th in range(1, H + 1):
        if H % th:
            continue
        est = (
            2 * th * W_p * C_p * in_b                       # x tile (double buffered)
            + 4 * W_p * C_p * in_b                          # 2 halo rows (double buffered)
            + 2 * th * W_p * C_p * out_b                    # out tile (double buffered)
            + (th + 2) * W_p * Cmid_p * mid_b               # mid scratch
            + (th + 2) * W_p * Cmid_p * 4                   # conv1 f32 intermediate
            + 5 * (th + 2) * W_p * Cmid_p * mid_b           # left/right + fused taps
            + th * W_p * C_p * 4                            # conv2 f32 accumulator
            + 2 * (C_p * Cmid_p + 9 * Cmid_p * C_p) * cdt_b # weights (double buffered)
        )
        if est <= budget:
            best = th
    return best


def _residual_kernel(x_ref, top_ref, bot_ref, w1_ref, b1_ref, w2_ref, b2_ref,
                     o_ref, mid_ref, *, real_w):
    """One (batch, row-tile) grid step.

    x_ref   : (1, TH, Wp, Cp)     tile rows of the input (original dtype)
    top_ref : (1, 1, Wp, Cp)      clamped row above the tile (straight from x)
    bot_ref : (1, 1, Wp, Cp)      clamped row below the tile (straight from x)
    w1_ref  : (Cp, Cmid_p)        1x1 conv weight, BN1 scale folded, compute dtype
    b1_ref  : (1, Cmid_p)         BN1 shift + conv1 bias (f32)
    w2_ref  : (3, 3*Cmid_p, Cp)   3x3 conv weight, dx fused into K, BN2 folded
    b2_ref  : (1, Cp)             BN2 shift + conv2 bias (f32)
    o_ref   : (1, TH, Wp, Cp)     output tile (original dtype)
    mid_ref : (TH+2, Wp, Cmid_p)  scratch for LeakyReLU(BN1(conv1)), compute dtype
    """
    _, TH, Wp, Cp = x_ref.shape
    Cmid = mid_ref.shape[-1]
    cdt = w1_ref.dtype

    t = pl.program_id(1)
    n_tiles = pl.num_programs(1)

    # ---- conv1 (1x1) + BN1 + LeakyReLU on tile rows + both halo rows, one dot
    rows = jnp.concatenate(
        [top_ref[0, 0], x_ref[0].reshape(TH * Wp, Cp), bot_ref[0, 0]], axis=0
    ).astype(cdt)                                           # ((TH+2)*Wp, Cp)
    mid = jnp.dot(rows, w1_ref[...], preferred_element_type=jnp.float32)
    mid = mid + b1_ref[...]
    mid = jnp.where(mid > 0, mid, 0.1 * mid)                # LeakyReLU(0.1), f32
    mid_ref[...] = mid.reshape(TH + 2, Wp, Cmid).astype(mid_ref.dtype)

    # Zero-padding for conv2 at the image borders.  With the clamped halo
    # index_maps these writes are load-bearing (they overwrite the clamped
    # garbage rows) — do not remove.
    @pl.when(t == 0)
    def _():
        mid_ref[0:1] = jnp.zeros((1, Wp, Cmid), mid_ref.dtype)

    @pl.when(t == n_tiles - 1)
    def _():
        mid_ref[TH + 1:TH + 2] = jnp.zeros((1, Wp, Cmid), mid_ref.dtype)

    # ---- conv2 (3x3, pad 1) + BN2 + LeakyReLU --------------------------------
    # dx taps are built with static column slices + explicit zero border
    # columns (no roll / iota / select) and fused into the matmul K dimension:
    # one dot per dy with K = 3 * Cmid_p.
    p = mid_ref[...]                                        # (TH+2, Wp, Cmid)
    zl = jnp.zeros((TH + 2, 1, Cmid), p.dtype)
    zr = jnp.zeros((TH + 2, Wp - real_w + 1, Cmid), p.dtype)
    left = jnp.concatenate([zl, p[:, :Wp - 1, :]], axis=1)      # mid[x-1]
    right = jnp.concatenate([p[:, 1:real_w, :], zr], axis=1)    # mid[x+1]
    taps = jnp.concatenate([left, p, right], axis=-1)       # (TH+2, Wp, 3*Cmid)

    M = TH * Wp
    K3 = 3 * Cmid
    acc = jnp.dot(taps[0:TH].reshape(M, K3), w2_ref[0],
                  preferred_element_type=jnp.float32)
    acc = acc + jnp.dot(taps[1:TH + 1].reshape(M, K3), w2_ref[1],
                        preferred_element_type=jnp.float32)
    acc = acc + jnp.dot(taps[2:TH + 2].reshape(M, K3), w2_ref[2],
                        preferred_element_type=jnp.float32)
    out = acc + b2_ref[...]
    out = jnp.where(out > 0, out, 0.1 * out)                # LeakyReLU(0.1)

    # ---- residual add with the un-cast input (full-precision skip path) -----
    x_res = x_ref[0].reshape(M, Cp).astype(jnp.float32)
    o_ref[0] = (x_res + out).reshape(TH, Wp, Cp).astype(o_ref.dtype)


def residual_forward_nhwc(x_nhwc, params, *, tile_rows=None, compute_dtype=None):
    N, H, W, C = x_nhwc.shape
    Cmid = params["w1"].shape[1]
    in_dtype = jnp.dtype(x_nhwc.dtype)
    cdt = jnp.dtype(compute_dtype) if compute_dtype is not None else in_dtype

    C_p = _round_up(C, _LANE)
    Cmid_p = _round_up(Cmid, _LANE)
    # Sublane alignment so (TH, W, C) -> (TH*W, C) collapses stay view-like.
    w_align = 16 if jnp.dtype(cdt).itemsize < 4 else 8
    W_p = _round_up(W, w_align)

    mid_dtype = cdt          # mid scratch / conv2 LHS in compute dtype

    budget, vmem_limit = _vmem_budget_and_limit()
    if tile_rows is None:
        tile_rows = _pick_tile_rows(
            H, W_p, C_p, Cmid_p,
            in_b=in_dtype.itemsize, out_b=in_dtype.itemsize,
            cdt_b=jnp.dtype(cdt).itemsize, mid_b=jnp.dtype(mid_dtype).itemsize,
            budget=budget)
    if H % tile_rows != 0:
        raise ValueError(f"tile_rows={tile_rows} must divide H={H}")
    TH = tile_rows
    n_tiles = H // TH

    # ---- lane / sublane padding (skipped entirely when already aligned) -----
    if C_p != C or W_p != W:
        xp = jnp.pad(x_nhwc, ((0, 0), (0, 0), (0, W_p - W), (0, C_p - C)))
    else:
        xp = x_nhwc

    w1 = params["w1"]
    b1 = params["b1"]
    w2 = params["w2"]
    b2 = params["b2"]
    if C_p != C or Cmid_p != Cmid:
        w1 = jnp.pad(w1, ((0, C_p - C), (0, Cmid_p - Cmid)))
        b1 = jnp.pad(b1, ((0, Cmid_p - Cmid),))
        w2 = jnp.pad(w2, ((0, 0), (0, 0), (0, Cmid_p - Cmid), (0, C_p - C)))
        b2 = jnp.pad(b2, ((0, C_p - C),))
    w1 = w1.astype(cdt)
    b1 = b1.reshape(1, Cmid_p).astype(jnp.float32)
    # Fuse the dx taps into the matmul K dimension:
    # (3, 3, Cmid_p, C_p) HWIO -> (3, 3*Cmid_p, C_p), rows [dx=0 | dx=1 | dx=2].
    w2 = w2.reshape(3, 3 * Cmid_p, C_p).astype(cdt)
    b2 = b2.reshape(1, C_p).astype(jnp.float32)

    kernel = functools.partial(_residual_kernel, real_w=W)

    grid_spec = pltpu.PrefetchScalarGridSpec(
        num_scalar_prefetch=0,
        grid=(N, n_tiles),
        in_specs=[
            pl.BlockSpec((1, TH, W_p, C_p), lambda n, t: (n, t, 0, 0)),
            # Halo rows come straight from the (padded) input with clamped row
            # indices — no extra HBM materialization of shifted copies.  The
            # garbage picked up at the image borders is overwritten by the
            # pl.when zero-row writes inside the kernel.
            pl.BlockSpec((1, 1, W_p, C_p),
                         lambda n, t: (n, jnp.maximum(t * TH - 1, 0), 0, 0)),
            pl.BlockSpec((1, 1, W_p, C_p),
                         lambda n, t: (n, jnp.minimum((t + 1) * TH, H - 1), 0, 0)),
            pl.BlockSpec((C_p, Cmid_p), lambda n, t: (0, 0)),
            pl.BlockSpec((1, Cmid_p), lambda n, t: (0, 0)),
            pl.BlockSpec((3, 3 * Cmid_p, C_p), lambda n, t: (0, 0, 0)),
            pl.BlockSpec((1, C_p), lambda n, t: (0, 0)),
        ],
        out_specs=pl.BlockSpec((1, TH, W_p, C_p), lambda n, t: (n, t, 0, 0)),
        scratch_shapes=[pltpu.VMEM((TH + 2, W_p, Cmid_p), mid_dtype)],
    )

    y = pl.pallas_call(
        kernel,
        out_shape=jax.ShapeDtypeStruct((N, H, W_p, C_p), in_dtype),
        grid_spec=grid_spec,
        compiler_params=pltpu.CompilerParams(
            dimension_semantics=("parallel", "parallel"),
            vmem_limit_bytes=vmem_limit),
    )(xp, xp, xp, w1, b1, w2, b2)

    if C_p != C or W_p != W:
        y = y[:, :, :W, :C]
    return y


@functools.partial(jax.jit, static_argnames=("tile_rows", "compute_dtype"))
def residual_forward_nchw(x_nchw, params, *, tile_rows=None, compute_dtype=None):
    # PyTorch NCHW boundary -> NHWC kernel layout -> back to NCHW.
    x_nhwc = jnp.transpose(x_nchw, (0, 2, 3, 1))
    y_nhwc = residual_forward_nhwc(x_nhwc, params, tile_rows=tile_rows,
                                   compute_dtype=compute_dtype)
    return jnp.transpose(y_nhwc, (0, 3, 1, 2))


# ---------------------- parameter construction (synthetic) ------------------
def _fold_bn_into_conv(w, conv_bias, gamma, beta, running_mean, running_var,
                       eps=1e-5, out_axis=-1):
    scale = gamma / jnp.sqrt(running_var + eps)
    shape = [1] * w.ndim
    shape[out_axis] = -1
    w_folded = w * scale.reshape(shape)
    b_folded = beta + scale * (conv_bias - running_mean)
    return w_folded, b_folded


def make_params(inC, key):
    Cmid = inC // 2
    ks = jax.random.split(key, 12)
    # conv1: PyTorch weight (Cmid, inC, 1, 1) stored here as (inC, Cmid)
    w1 = jax.random.normal(ks[0], (inC, Cmid), jnp.float32) / jnp.sqrt(inC)
    b1c = 0.1 * jax.random.normal(ks[1], (Cmid,), jnp.float32)
    g1 = 0.5 + jax.random.uniform(ks[2], (Cmid,), jnp.float32)
    be1 = 0.1 * jax.random.normal(ks[3], (Cmid,), jnp.float32)
    rm1 = 0.1 * jax.random.normal(ks[4], (Cmid,), jnp.float32)
    rv1 = 0.5 + jax.random.uniform(ks[5], (Cmid,), jnp.float32)
    w1f, b1f = _fold_bn_into_conv(w1, b1c, g1, be1, rm1, rv1, out_axis=1)

    # conv2: PyTorch weight (inC, Cmid, 3, 3) stored here as HWIO (3, 3, Cmid, inC)
    w2 = jax.random.normal(ks[6], (3, 3, Cmid, inC), jnp.float32) / jnp.sqrt(9 * Cmid)
    b2c = 0.1 * jax.random.normal(ks[7], (inC,), jnp.float32)
    g2 = 0.5 + jax.random.uniform(ks[8], (inC,), jnp.float32)
    be2 = 0.1 * jax.random.normal(ks[9], (inC,), jnp.float32)
    rm2 = 0.1 * jax.random.normal(ks[10], (inC,), jnp.float32)
    rv2 = 0.5 + jax.random.uniform(ks[11], (inC,), jnp.float32)
    w2f, b2f = _fold_bn_into_conv(w2, b2c, g2, be2, rm2, rv2, out_axis=3)

    return dict(w1=w1f, b1=b1f, w2=w2f, b2=b2f)


# ---------------------------- pure-JAX reference ----------------------------
def reference_nchw(x_nchw, params):
    x = jnp.transpose(x_nchw, (0, 2, 3, 1)).astype(jnp.float32)   # NHWC
    C = x.shape[-1]
    Cmid = params["w1"].shape[1]
    dn = ("NHWC", "HWIO", "NHWC")
    mid = lax.conv_general_dilated(
        x, params["w1"].reshape(1, 1, C, Cmid), (1, 1), "VALID",
        dimension_numbers=dn, precision=lax.Precision.HIGHEST)
    mid = mid + params["b1"]
    mid = jnp.where(mid > 0, mid, 0.1 * mid)
    out = lax.conv_general_dilated(
        mid, params["w2"], (1, 1), ((1, 1), (1, 1)),
        dimension_numbers=dn, precision=lax.Precision.HIGHEST)
    out = out + params["b2"]
    out = jnp.where(out > 0, out, 0.1 * out)
    return jnp.transpose(x + out, (0, 3, 1, 2))


if __name__ == "__main__":
    N, C, H, W = 2, 8, 16, 16          # inC must be even (inC/2 in the module)
    key = jax.random.PRNGKey(0)
    kx, kp = jax.random.split(key)
    x = jax.random.normal(kx, (N, C, H, W), jnp.float32)   # NCHW like PyTorch
    params = make_params(C, kp)

    y_ref = reference_nchw(x, params)

    # Tolerance note: the kernel's f32 matmuls may run at the TPU default
    # (bf16-pass) matmul precision while the reference uses HIGHEST, so 2e-2
    # is tight enough to catch layout/fusion bugs (O(1) errors) but robust to
    # accumulation-precision differences.
    RTOL_F32, ATOL_F32 = 2e-2, 2e-2

    # f32 path, forced row tiling (2 tiles/image -> exercises clamped halos).
    y32 = residual_forward_nchw(x, params, tile_rows=8, compute_dtype=jnp.float32)
    y32 = jax.block_until_ready(y32)
    assert y32.shape == (N, C, H, W)
    assert jnp.allclose(y32, y_ref, rtol=RTOL_F32, atol=ATOL_F32), \
        float(jnp.max(jnp.abs(y32 - y_ref)))

    # f32 path, auto tile size (VMEM-budget driven, typically one tile here).
    y32a = residual_forward_nchw(x, params)
    y32a = jax.block_until_ready(y32a)
    assert jnp.allclose(y32a, y_ref, rtol=RTOL_F32, atol=ATOL_F32), \
        float(jnp.max(jnp.abs(y32a - y_ref)))

    # bf16 compute path (MXU operands + mid scratch in bf16, f32 accumulation,
    # full-precision residual add), forced 4-row tiles.
    ybf = residual_forward_nchw(x, params, tile_rows=4,
                                compute_dtype=jnp.bfloat16)
    ybf = jax.block_until_ready(ybf)
    assert ybf.shape == (N, C, H, W)
    assert jnp.allclose(ybf.astype(jnp.float32), y_ref, rtol=1e-1, atol=2e-1), \
        float(jnp.max(jnp.abs(ybf.astype(jnp.float32) - y_ref)))

    print("KERNEL_OK")
</pallas_src>

<mosaic_0001>
module attributes {stable_mosaic.version = 11 : i64} {
  func.func @_residual_kernel(%arg0: i32, %arg1: i32, %arg2: memref<1x8x16x128xf32, #tpu.memory_space<vmem>>, %arg3: memref<1x1x16x128xf32, #tpu.memory_space<vmem>>, %arg4: memref<1x1x16x128xf32, #tpu.memory_space<vmem>>, %arg5: memref<128x128xf32, #tpu.memory_space<vmem>>, %arg6: memref<1x128xf32, #tpu.memory_space<vmem>>, %arg7: memref<3x384x128xf32, #tpu.memory_space<vmem>>, %arg8: memref<1x128xf32, #tpu.memory_space<vmem>>, %arg9: memref<1x8x16x128xf32, #tpu.memory_space<vmem>>, %arg10: memref<10x16x128xf32, #tpu.memory_space<vmem>>) attributes {dimension_semantics = [#tpu.dimension_semantics<parallel>, #tpu.dimension_semantics<parallel>], iteration_bounds = array<i64: 2, 2>, scalar_prefetch = 0 : i64, scratch_operands = 1 : i64, tpu.core_type = #tpu.core_type<tc>, window_params = [{transform_indices = @transform_0, window_bounds = array<i64: 1, 8, 16, 128>}, {transform_indices = @transform_1, window_bounds = array<i64: 1, 1, 16, 128>}, {transform_indices = @transform_2, window_bounds = array<i64: 1, 1, 16, 128>}, {pipeline_mode = #tpu.pipeline_mode<synchronous>, transform_indices = @transform_3, window_bounds = array<i64: 128, 128>}, {pipeline_mode = #tpu.pipeline_mode<synchronous>, transform_indices = @transform_4, window_bounds = array<i64: 1, 128>}, {pipeline_mode = #tpu.pipeline_mode<synchronous>, transform_indices = @transform_5, window_bounds = array<i64: 3, 384, 128>}, {pipeline_mode = #tpu.pipeline_mode<synchronous>, transform_indices = @transform_6, window_bounds = array<i64: 1, 128>}, {transform_indices = @transform_7, window_bounds = array<i64: 1, 8, 16, 128>}]} {
    %c0 = arith.constant 0 : index
    %c0_0 = arith.constant 0 : index
    %c0_1 = arith.constant 0 : index
    %c0_2 = arith.constant 0 : index
    %0 = vector.load %arg3[%c0, %c0_0, %c0_1, %c0_2] : memref<1x1x16x128xf32, #tpu.memory_space<vmem>>, vector<1x1x16x128xf32>
    %1 = vector.shape_cast %0 : vector<1x1x16x128xf32> to vector<16x128xf32>
    %c0_3 = arith.constant 0 : index
    %c0_4 = arith.constant 0 : index
    %c0_5 = arith.constant 0 : index
    %c0_6 = arith.constant 0 : index
    %2 = vector.load %arg2[%c0_3, %c0_4, %c0_5, %c0_6] : memref<1x8x16x128xf32, #tpu.memory_space<vmem>>, vector<1x8x16x128xf32>
    %3 = vector.shape_cast %2 : vector<1x8x16x128xf32> to vector<8x16x128xf32>
    %4 = vector.shape_cast %3 : vector<8x16x128xf32> to vector<128x128xf32>
    %c0_7 = arith.constant 0 : index
    %c0_8 = arith.constant 0 : index
    %c0_9 = arith.constant 0 : index
    %c0_10 = arith.constant 0 : index
    %5 = vector.load %arg4[%c0_7, %c0_8, %c0_9, %c0_10] : memref<1x1x16x128xf32, #tpu.memory_space<vmem>>, vector<1x1x16x128xf32>
    %6 = vector.shape_cast %5 : vector<1x1x16x128xf32> to vector<16x128xf32>
    %7 = tpu.concatenate %1, %4, %6 in 0 : vector<16x128xf32>, vector<128x128xf32>, vector<16x128xf32> -> vector<160x128xf32>
    %c0_11 = arith.constant 0 : index
    %c0_12 = arith.constant 0 : index
    %8 = vector.load %arg5[%c0_11, %c0_12] : memref<128x128xf32, #tpu.memory_space<vmem>>, vector<128x128xf32>
    %cst = arith.constant dense<0.000000e+00> : vector<160x128xf32>
    %9 = tpu.matmul %7, %8, %cst {dimension_numbers = #tpu.dot_dimension_numbers<[1], [0], [0], [1], [0, 0, 1, 1], [], []>} : vector<160x128xf32>, vector<128x128xf32>, vector<160x128xf32> -> vector<160x128xf32>
    %c0_13 = arith.constant 0 : index
    %c0_14 = arith.constant 0 : index
    %10 = vector.load %arg6[%c0_13, %c0_14] : memref<1x128xf32, #tpu.memory_space<vmem>>, vector<1x128xf32>
    %11 = vector.broadcast %10 : vector<1x128xf32> to vector<160x128xf32>
    %12 = arith.addf %9, %11 : vector<160x128xf32>
    %cst_15 = arith.constant 0.000000e+00 : f32
    %13 = vector.broadcast %cst_15 : f32 to vector<160x128xf32>
    %14 = arith.cmpf ogt, %12, %13 : vector<160x128xf32>
    %cst_16 = arith.constant 1.000000e-01 : f32
    %15 = vector.broadcast %cst_16 : f32 to vector<160x128xf32>
    %16 = arith.mulf %15, %12 : vector<160x128xf32>
    %17 = arith.select %14, %12, %16 : vector<160x128xi1>, vector<160x128xf32>
    %18 = vector.shape_cast %17 : vector<160x128xf32> to vector<10x16x128xf32>
    %c0_17 = arith.constant 0 : index
    %c0_18 = arith.constant 0 : index
    %c0_19 = arith.constant 0 : index
    %19 = vector.load %arg10[%c0_17, %c0_18, %c0_19] : memref<10x16x128xf32, #tpu.memory_space<vmem>>, vector<10x16x128xf32>
    tpu.vector_store %arg10[%c0_17, %c0_18, %c0_19], %18 {strides = array<i32>} : memref<10x16x128xf32, #tpu.memory_space<vmem>>, vector<10x16x128xf32>,
    %c0_i32 = arith.constant 0 : i32
    %20 = arith.cmpi eq, %arg1, %c0_i32 : i32
    %21 = arith.extui %20 : i1 to i32
    %c0_i32_20 = arith.constant 0 : i32
    %22 = arith.cmpi ne, %21, %c0_i32_20 : i32
    scf.if %22 {
      %cst_49 = arith.constant 0.000000e+00 : f32
      %67 = vector.broadcast %cst_49 : f32 to vector<1x16x128xf32>
      %c0_50 = arith.constant 0 : index
      %c0_51 = arith.constant 0 : index
      %c0_52 = arith.constant 0 : index
      %68 = vector.load %arg10[%c0_50, %c0_51, %c0_52] : memref<10x16x128xf32, #tpu.memory_space<vmem>>, vector<1x16x128xf32>
      tpu.vector_store %arg10[%c0_50, %c0_51, %c0_52], %67 {strides = array<i32>} : memref<10x16x128xf32, #tpu.memory_space<vmem>>, vector<1x16x128xf32>,
    } else {
    }
    %c1_i32 = arith.constant 1 : i32
    %23 = arith.cmpi eq, %arg1, %c1_i32 : i32
    %24 = arith.extui %23 : i1 to i32
    %c0_i32_21 = arith.constant 0 : i32
    %25 = arith.cmpi ne, %24, %c0_i32_21 : i32
    scf.if %25 {
      %cst_49 = arith.constant 0.000000e+00 : f32
      %67 = vector.broadcast %cst_49 : f32 to vector<1x16x128xf32>
      %c9 = arith.constant 9 : index
      %c0_50 = arith.constant 0 : index
      %c0_51 = arith.constant 0 : index
      %68 = vector.load %arg10[%c9, %c0_50, %c0_51] : memref<10x16x128xf32, #tpu.memory_space<vmem>>, vector<1x16x128xf32>
      tpu.vector_store %arg10[%c9, %c0_50, %c0_51], %67 {strides = array<i32>} : memref<10x16x128xf32, #tpu.memory_space<vmem>>, vector<1x16x128xf32>,
    } else {
    }
    %c0_22 = arith.constant 0 : index
    %c0_23 = arith.constant 0 : index
    %c0_24 = arith.constant 0 : index
    %26 = vector.load %arg10[%c0_22, %c0_23, %c0_24] : memref<10x16x128xf32, #tpu.memory_space<vmem>>, vector<10x16x128xf32>
    %cst_25 = arith.constant 0.000000e+00 : f32
    %27 = vector.broadcast %cst_25 : f32 to vector<10x1x128xf32>
    %cst_26 = arith.constant 0.000000e+00 : f32
    %28 = vector.broadcast %cst_26 : f32 to vector<10x1x128xf32>
    %29 = vector.extract_strided_slice %26 {offsets = [0, 0, 0], sizes = [10, 15, 128], strides = [1, 1, 1]} : vector<10x16x128xf32> to vector<10x15x128xf32>
    %30 = tpu.concatenate %27, %29 in 1 : vector<10x1x128xf32>, vector<10x15x128xf32> -> vector<10x16x128xf32>
    %31 = vector.extract_strided_slice %26 {offsets = [0, 1, 0], sizes = [10, 15, 128], strides = [1, 1, 1]} : vector<10x16x128xf32> to vector<10x15x128xf32>
    %32 = tpu.concatenate %31, %28 in 1 : vector<10x15x128xf32>, vector<10x1x128xf32> -> vector<10x16x128xf32>
    %33 = tpu.concatenate %30, %26, %32 in 2 : vector<10x16x128xf32>, vector<10x16x128xf32>, vector<10x16x128xf32> -> vector<10x16x384xf32>
    %34 = vector.extract_strided_slice %33 {offsets = [0, 0, 0], sizes = [8, 16, 384], strides = [1, 1, 1]} : vector<10x16x384xf32> to vector<8x16x384xf32>
    %35 = vector.shape_cast %34 : vector<8x16x384xf32> to vector<128x384xf32>
    %c0_27 = arith.constant 0 : index
    %c0_28 = arith.constant 0 : index
    %c0_29 = arith.constant 0 : index
    %36 = vector.load %arg7[%c0_27, %c0_28, %c0_29] : memref<3x384x128xf32, #tpu.memory_space<vmem>>, vector<1x384x128xf32>
    %37 = vector.shape_cast %36 : vector<1x384x128xf32> to vector<384x128xf32>
    %cst_30 = arith.constant dense<0.000000e+00> : vector<128x128xf32>
    %38 = tpu.matmul %35, %37, %cst_30 {dimension_numbers = #tpu.dot_dimension_numbers<[1], [0], [0], [1], [0, 0, 1, 1], [], []>} : vector<128x384xf32>, vector<384x128xf32>, vector<128x128xf32> -> vector<128x128xf32>
    %39 = vector.extract_strided_slice %33 {offsets = [1, 0, 0], sizes = [8, 16, 384], strides = [1, 1, 1]} : vector<10x16x384xf32> to vector<8x16x384xf32>
    %40 = vector.shape_cast %39 : vector<8x16x384xf32> to vector<128x384xf32>
    %c1 = arith.constant 1 : index
    %c0_31 = arith.constant 0 : index
    %c0_32 = arith.constant 0 : index
    %41 = vector.load %arg7[%c1, %c0_31, %c0_32] : memref<3x384x128xf32, #tpu.memory_space<vmem>>, vector<1x384x128xf32>
    %42 = vector.shape_cast %41 : vector<1x384x128xf32> to vector<384x128xf32>
    %cst_33 = arith.constant dense<0.000000e+00> : vector<128x128xf32>
    %43 = tpu.matmul %40, %42, %cst_33 {dimension_numbers = #tpu.dot_dimension_numbers<[1], [0], [0], [1], [0, 0, 1, 1], [], []>} : vector<128x384xf32>, vector<384x128xf32>, vector<128x128xf32> -> vector<128x128xf32>
    %44 = arith.addf %38, %43 : vector<128x128xf32>
    %45 = vector.extract_strided_slice %33 {offsets = [2, 0, 0], sizes = [8, 16, 384], strides = [1, 1, 1]} : vector<10x16x384xf32> to vector<8x16x384xf32>
    %46 = vector.shape_cast %45 : vector<8x16x384xf32> to vector<128x384xf32>
    %c2 = arith.constant 2 : index
    %c0_34 = arith.constant 0 : index
    %c0_35 = arith.constant 0 : index
    %47 = vector.load %arg7[%c2, %c0_34, %c0_35] : memref<3x384x128xf32, #tpu.memory_space<vmem>>, vector<1x384x128xf32>
    %48 = vector.shape_cast %47 : vector<1x384x128xf32> to vector<384x128xf32>
    %cst_36 = arith.constant dense<0.000000e+00> : vector<128x128xf32>
    %49 = tpu.matmul %46, %48, %cst_36 {dimension_numbers = #tpu.dot_dimension_numbers<[1], [0], [0], [1], [0, 0, 1, 1], [], []>} : vector<128x384xf32>, vector<384x128xf32>, vector<128x128xf32> -> vector<128x128xf32>
    %50 = arith.addf %44, %49 : vector<128x128xf32>
    %c0_37 = arith.constant 0 : index
    %c0_38 = arith.constant 0 : index
    %51 = vector.load %arg8[%c0_37, %c0_38] : memref<1x128xf32, #tpu.memory_space<vmem>>, vector<1x128xf32>
    %52 = vector.broadcast %51 : vector<1x128xf32> to vector<128x128xf32>
    %53 = arith.addf %50, %52 : vector<128x128xf32>
    %cst_39 = arith.constant 0.000000e+00 : f32
    %54 = vector.broadcast %cst_39 : f32 to vector<128x128xf32>
    %55 = arith.cmpf ogt, %53, %54 : vector<128x128xf32>
    %cst_40 = arith.constant 1.000000e-01 : f32
    %56 = vector.broadcast %cst_40 : f32 to vector<128x128xf32>
    %57 = arith.mulf %56, %53 : vector<128x128xf32>
    %58 = arith.select %55, %53, %57 : vector<128x128xi1>, vector<128x128xf32>
    %c0_41 = arith.constant 0 : index
    %c0_42 = arith.constant 0 : index
    %c0_43 = arith.constant 0 : index
    %c0_44 = arith.constant 0 : index
    %59 = vector.load %arg2[%c0_41, %c0_42, %c0_43, %c0_44] : memref<1x8x16x128xf32, #tpu.memory_space<vmem>>, vector<1x8x16x128xf32>
    %60 = vector.shape_cast %59 : vector<1x8x16x128xf32> to vector<8x16x128xf32>
    %61 = vector.shape_cast %60 : vector<8x16x128xf32> to vector<128x128xf32>
    %62 = arith.addf %61, %58 : vector<128x128xf32>
    %63 = vector.shape_cast %62 : vector<128x128xf32> to vector<8x16x128xf32>
    %c0_45 = arith.constant 0 : index
    %c0_46 = arith.constant 0 : index
    %c0_47 = arith.constant 0 : index
    %c0_48 = arith.constant 0 : index
    %64 = vector.load %arg9[%c0_45, %c0_46, %c0_47, %c0_48] : memref<1x8x16x128xf32, #tpu.memory_space<vmem>>, vector<1x8x16x128xf32>
    %65 = vector.shape_cast %64 : vector<1x8x16x128xf32> to vector<8x16x128xf32>
    %66 = vector.shape_cast %63 : vector<8x16x128xf32> to vector<1x8x16x128xf32>
    tpu.vector_store %arg9[%c0_45, %c0_46, %c0_47, %c0_48], %66 {strides = array<i32>} : memref<1x8x16x128xf32, #tpu.memory_space<vmem>>, vector<1x8x16x128xf32>,
    return
  }
  func.func @transform_0(%arg0: i32, %arg1: i32) -> (i32, i32, i32, i32) {
    %c0_i32 = arith.constant 0 : i32
    %c0_i32_0 = arith.constant 0 : i32
    %c0_i32_1 = arith.constant 0 : i32
    return %arg0, %arg1, %c0_i32, %c0_i32_0 : i32, i32, i32, i32
  }
  func.func @transform_1(%arg0: i32, %arg1: i32) -> (i32, i32, i32, i32) {
    %c8_i32 = arith.constant 8 : i32
    %0 = arith.muli %arg1, %c8_i32 : i32
    %c1_i32 = arith.constant 1 : i32
    %1 = arith.subi %0, %c1_i32 : i32
    %c0_i32 = arith.constant 0 : i32
    %2 = arith.maxsi %1, %c0_i32 : i32
    %c0_i32_0 = arith.constant 0 : i32
    %c0_i32_1 = arith.constant 0 : i32
    %c0_i32_2 = arith.constant 0 : i32
    return %arg0, %2, %c0_i32_0, %c0_i32_1 : i32, i32, i32, i32
  }
  func.func @transform_2(%arg0: i32, %arg1: i32) -> (i32, i32, i32, i32) {
    %c1_i32 = arith.constant 1 : i32
    %0 = arith.addi %arg1, %c1_i32 : i32
    %c8_i32 = arith.constant 8 : i32
    %1 = arith.muli %0, %c8_i32 : i32
    %c15_i32 = arith.constant 15 : i32
    %2 = arith.minsi %1, %c15_i32 : i32
    %c0_i32 = arith.constant 0 : i32
    %c0_i32_0 = arith.constant 0 : i32
    %c0_i32_1 = arith.constant 0 : i32
    return %arg0, %2, %c0_i32, %c0_i32_0 : i32, i32, i32, i32
  }
  func.func @transform_3(%arg0: i32, %arg1: i32) -> (i32, i32) {
    %c0_i32 = arith.constant 0 : i32
    %c0_i32_0 = arith.constant 0 : i32
    %c0_i32_1 = arith.constant 0 : i32
    return %c0_i32, %c0_i32_0 : i32, i32
  }
  func.func @transform_4(%arg0: i32, %arg1: i32) -> (i32, i32) {
    %c0_i32 = arith.constant 0 : i32
    %c0_i32_0 = arith.constant 0 : i32
    %c0_i32_1 = arith.constant 0 : i32
    return %c0_i32, %c0_i32_0 : i32, i32
  }
  func.func @transform_5(%arg0: i32, %arg1: i32) -> (i32, i32, i32) {
    %c0_i32 = arith.constant 0 : i32
    %c0_i32_0 = arith.constant 0 : i32
    %c0_i32_1 = arith.constant 0 : i32
    %c0_i32_2 = arith.constant 0 : i32
    return %c0_i32, %c0_i32_0, %c0_i32_1 : i32, i32, i32
  }
  func.func @transform_6(%arg0: i32, %arg1: i32) -> (i32, i32) {
    %c0_i32 = arith.constant 0 : i32
    %c0_i32_0 = arith.constant 0 : i32
    %c0_i32_1 = arith.constant 0 : i32
    return %c0_i32, %c0_i32_0 : i32, i32
  }
  func.func @transform_7(%arg0: i32, %arg1: i32) -> (i32, i32, i32, i32) {
    %c0_i32 = arith.constant 0 : i32
    %c0_i32_0 = arith.constant 0 : i32
    %c0_i32_1 = arith.constant 0 : i32
    return %arg0, %arg1, %c0_i32, %c0_i32_0 : i32, i32, i32, i32
  }
}

</mosaic_0001>

<llo_original>
// kernel: residual_forward_nchw.1
$region0: #{residual_forward_nchw.1}
  #allocation0 [shape = 'u32[]', space=smem, size = 0x4, offset = 0x4, fixed_abs, tag = 'smem constant byte address 0x4 - core index']
  #allocation1 [shape = 'u32[144,128]{1,0:T(1,128)}', space=vmem, size = 0x12000, scoped, tag = 'internal scratch']
  #allocation2 [shape = 'f32[10,16,128]{2,1,0:T(8,128)}', space=vmem, size = 0x14000, scoped, tag = 'scratch operand']
  %s0 = inlined_call_operand.vmem [shape: f32[2,16,16,128], index: 0, kind: input, shape index: {}, may-alias: {0,1,2}]
  %s1 = inlined_call_operand.vmem [shape: f32[2,16,16,128], index: 1, kind: input, shape index: {}, may-alias: {0,1,2}]
  %s2 = inlined_call_operand.vmem [shape: f32[2,16,16,128], index: 2, kind: input, shape index: {}, may-alias: {0,1,2}]
  %s3 = inlined_call_operand.vmem [shape: f32[128,128], index: 3, kind: input, shape index: {}]
  %s4 = inlined_call_operand.vmem [shape: f32[1,128], index: 4, kind: input, shape index: {}]
  %s5 = inlined_call_operand.vmem [shape: f32[3,384,128], index: 5, kind: input, shape index: {}]
  %s6 = inlined_call_operand.vmem [shape: f32[1,128], index: 6, kind: input, shape index: {}]
  %s7 = inlined_call_operand.vmem [shape: f32[2,16,16,128], index: 7, kind: output, shape index: {}]
  %s8 = sld [smem:[#allocation0]]
  $region69: #{residual_forward_nchw.1} parent=0
    _
  %s10 = ssub.s32 1, %s8
  %s11 = scalar_select 0, %s10, %s8
  loop: start=0, step=1, limit=6
  $region2: #{residual_forward_nchw.1} parent=0 // loop_pre_header
    _
  $region3: #{residual_forward_nchw.1} parent=0 // loop_header
    %s13 = sphi 0, %s17
    %p14 = scmp.ge.s32.totalorder %s13, 6
    %s20 = sphi 0, %s32
    %s21 = sphi 0, %s28
    %s22 = sphi 0, %s20
    %s23 = sphi 0, %s21
    %s24 = sphi 0, %s22
    %s25 = sphi 0, %s23
    %s37 = sphi 0, %s39
    %s40 = sphi 0, %s37
    %s41 = sphi 0, %s40
    %s57 = sphi 0, %s41
    %s73 = sphi 0, %s75
    %s76 = sphi 0, %s73
    %s77 = sphi 0, %s76
    %s93 = sphi 0, %s77
    %s109 = sphi 0, %s111
    %s112 = sphi 0, %s109
    %s113 = sphi 0, %s112
    %s129 = sphi 0, %s113
    %s133 = sphi 0, %s133
    %s135 = sphi 0, %s133
    %s136 = sphi 0, %s135
    %s150 = sphi 0, %s136
    %s154 = sphi 0, %s154
    %s156 = sphi 0, %s154
    %s157 = sphi 0, %s156
    %s171 = sphi 0, %s157
    %s175 = sphi 0, %s175
    %s177 = sphi 0, %s175
    %s178 = sphi 0, %s177
    %s192 = sphi 0, %s178
    %s196 = sphi 0, %s196
    %s198 = sphi 0, %s196
    %s199 = sphi 0, %s198
    %s213 = sphi 0, %s199
    %s221 = sphi 0, %s223
    %s224 = sphi 0, %s221
    %s225 = sphi 0, %s224
    %s241 = sphi 0, %s225
  $region4: #{residual_forward_nchw.1} parent=0 // loop_header_branch
    %16 = sbr.rel (%p14) target = $region8
  $region5: #{residual_forward_nchw.1} parent=0 // loop_body
    %s18 = ssub.s32 %s13, 1
    %s19 = ssub.s32 %s13, 2
    %s26 = sadd.s32 1, %s21
    %p27 = scmp.ge.s32.totalorder %s26, 2
    %s28 = scalar_select %p27, 0, %s26
    %s29 = sadd.s32 1, %s20
    %s30 = scalar_select %p27, %s29, %s20
    %p31 = scmp.ge.s32.totalorder %s30, 2
    %s32 = scalar_select %p31, 0, %s30
    %s33 = ssub.s32 %s20, %s32
    %s34 = ssub.s32 %s21, %s28
    %s35 = sor.u32 %s33, %s34
    %p36 = scmp.eq.s32.totalorder %s35, 0
    %s38 = sadd.s32 %s37, 1
    %s39 = scalar_select %p36, %s37, %s38
    %p42 = pneg %p36
    %p43 = scmp.eq.s32.totalorder %s13, 3
    %p44 = por %p42, %p43
    %p45 = scmp.ne.s32.totalorder %s37, %s40
    %p46 = scmp.eq.s32.totalorder %s13, 0
    %p47 = por %p45, %p46
    %p48 = scmp.ne.s32.totalorder %s37, %s40
    %p49 = scmp.eq.s32.totalorder %s18, 3
    %p50 = por %p48, %p49
    %p51 = scmp.ne.s32.totalorder %s40, %s41
    %p52 = scmp.eq.s32.totalorder %s18, 0
    %p53 = por %p51, %p52
    %p54 = scmp.ne.s32.totalorder %s40, %s41
    %p55 = scmp.eq.s32.totalorder %s19, 3
    %p56 = por %p54, %p55
    %p58 = scmp.ne.s32.totalorder %s41, %s57
    %p59 = scmp.eq.s32.totalorder %s19, 0
    %p60 = por %p58, %p59
    %s61 = smul.u32 %s21, 8
    %s62 = ssub.s32 %s61, 1
    %p63 = scmp.gt.s32.totalorder %s62, 0
    %s64 = scalar_select %p63, %s62, 0
    %s65 = smul.u32 %s28, 8
    %s66 = ssub.s32 %s65, 1
    %p67 = scmp.gt.s32.totalorder %s66, 0
    %s68 = scalar_select %p67, %s66, 0
    %s69 = ssub.s32 %s20, %s32
    %s70 = ssub.s32 %s64, %s68
    %s71 = sor.u32 %s69, %s70
    %p72 = scmp.eq.s32.totalorder %s71, 0
    %s74 = sadd.s32 %s73, 1
    %s75 = scalar_select %p72, %s73, %s74
    %p78 = pneg %p72
    %p79 = scmp.eq.s32.totalorder %s13, 3
    %p80 = por %p78, %p79
    %p81 = scmp.ne.s32.totalorder %s73, %s76
    %p82 = scmp.eq.s32.totalorder %s13, 0
    %p83 = por %p81, %p82
    %p84 = scmp.ne.s32.totalorder %s73, %s76
    %p85 = scmp.eq.s32.totalorder %s18, 3
    %p86 = por %p84, %p85
    %p87 = scmp.ne.s32.totalorder %s76, %s77
    %p88 = scmp.eq.s32.totalorder %s18, 0
    %p89 = por %p87, %p88
    %p90 = scmp.ne.s32.totalorder %s76, %s77
    %p91 = scmp.eq.s32.totalorder %s19, 3
    %p92 = por %p90, %p91
    %p94 = scmp.ne.s32.totalorder %s77, %s93
    %p95 = scmp.eq.s32.totalorder %s19, 0
    %p96 = por %p94, %p95
    %s97 = sadd.s32 %s21, 1
    %s98 = smul.u32 %s97, 8
    %p99 = scmp.lt.s32.totalorder %s98, 15
    %s100 = scalar_select %p99, %s98, 15
    %s101 = sadd.s32 %s28, 1
    %s102 = smul.u32 %s101, 8
    %p103 = scmp.lt.s32.totalorder %s102, 15
    %s104 = scalar_select %p103, %s102, 15
    %s105 = ssub.s32 %s20, %s32
    %s106 = ssub.s32 %s100, %s104
    %s107 = sor.u32 %s105, %s106
    %p108 = scmp.eq.s32.totalorder %s107, 0
    %s110 = sadd.s32 %s109, 1
    %s111 = scalar_select %p108, %s109, %s110
    %p114 = pneg %p108
    %p115 = scmp.eq.s32.totalorder %s13, 3
    %p116 = por %p114, %p115
    %p117 = scmp.ne.s32.totalorder %s109, %s112
    %p118 = scmp.eq.s32.totalorder %s13, 0
    %p119 = por %p117, %p118
    %p120 = scmp.ne.s32.totalorder %s109, %s112
    %p121 = scmp.eq.s32.totalorder %s18, 3
    %p122 = por %p120, %p121
    %p123 = scmp.ne.s32.totalorder %s112, %s113
    %p124 = scmp.eq.s32.totalorder %s18, 0
    %p125 = por %p123, %p124
    %p126 = scmp.ne.s32.totalorder %s112, %s113
    %p127 = scmp.eq.s32.totalorder %s19, 3
    %p128 = por %p126, %p127
    %p130 = scmp.ne.s32.totalorder %s113, %s129
    %p131 = scmp.eq.s32.totalorder %s19, 0
    %p132 = por %p130, %p131
    %s134 = sadd.s32 %s133, 1
    %p137 = scmp.eq.s32.totalorder %s13, 3
    %p138 = scmp.ne.s32.totalorder %s133, %s135
    %p139 = scmp.eq.s32.totalorder %s13, 0
    %p140 = por %p138, %p139
    %p141 = scmp.ne.s32.totalorder %s133, %s135
    %p142 = scmp.eq.s32.totalorder %s18, 3
    %p143 = por %p141, %p142
    %p144 = scmp.ne.s32.totalorder %s135, %s136
    %p145 = scmp.eq.s32.totalorder %s18, 0
    %p146 = por %p144, %p145
    %p147 = scmp.ne.s32.totalorder %s135, %s136
    %p148 = scmp.eq.s32.totalorder %s19, 3
    %p149 = por %p147, %p148
    %p151 = scmp.ne.s32.totalorder %s136, %s150
    %p152 = scmp.eq.s32.totalorder %s19, 0
    %p153 = por %p151, %p152
    %s155 = sadd.s32 %s154, 1
    %p158 = scmp.eq.s32.totalorder %s13, 3
    %p159 = scmp.ne.s32.totalorder %s154, %s156
    %p160 = scmp.eq.s32.totalorder %s13, 0
    %p161 = por %p159, %p160
    %p162 = scmp.ne.s32.totalorder %s154, %s156
    %p163 = scmp.eq.s32.totalorder %s18, 3
    %p164 = por %p162, %p163
    %p165 = scmp.ne.s32.totalorder %s156, %s157
    %p166 = scmp.eq.s32.totalorder %s18, 0
    %p167 = por %p165, %p166
    %p168 = scmp.ne.s32.totalorder %s156, %s157
    %p169 = scmp.eq.s32.totalorder %s19, 3
    %p170 = por %p168, %p169
    %p172 = scmp.ne.s32.totalorder %s157, %s171
    %p173 = scmp.eq.s32.totalorder %s19, 0
    %p174 = por %p172, %p173
    %s176 = sadd.s32 %s175, 1
    %p179 = scmp.eq.s32.totalorder %s13, 3
    %p180 = scmp.ne.s32.totalorder %s175, %s177
    %p181 = scmp.eq.s32.totalorder %s13, 0
    %p182 = por %p180, %p181
    %p183 = scmp.ne.s32.totalorder %s175, %s177
    %p184 = scmp.eq.s32.totalorder %s18, 3
    %p185 = por %p183, %p184
    %p186 = scmp.ne.s32.totalorder %s177, %s178
    %p187 = scmp.eq.s32.totalorder %s18, 0
    %p188 = por %p186, %p187
    %p189 = scmp.ne.s32.totalorder %s177, %s178
    %p190 = scmp.eq.s32.totalorder %s19, 3
    %p191 = por %p189, %p190
    %p193 = scmp.ne.s32.totalorder %s178, %s192
    %p194 = scmp.eq.s32.totalorder %s19, 0
    %p195 = por %p193, %p194
    %s197 = sadd.s32 %s196, 1
    %p200 = scmp.eq.s32.totalorder %s13, 3
    %p201 = scmp.ne.s32.totalorder %s196, %s198
    %p202 = scmp.eq.s32.totalorder %s13, 0
    %p203 = por %p201, %p202
    %p204 = scmp.ne.s32.totalorder %s196, %s198
    %p205 = scmp.eq.s32.totalorder %s18, 3
    %p206 = por %p204, %p205
    %p207 = scmp.ne.s32.totalorder %s198, %s199
    %p208 = scmp.eq.s32.totalorder %s18, 0
    %p209 = por %p207, %p208
    %p210 = scmp.ne.s32.totalorder %s198, %s199
    %p211 = scmp.eq.s32.totalorder %s19, 3
    %p212 = por %p210, %p211
    %p214 = scmp.ne.s32.totalorder %s199, %s213
    %p215 = scmp.eq.s32.totalorder %s19, 0
    %p216 = por %p214, %p215
    %s217 = ssub.s32 %s20, %s32
    %s218 = ssub.s32 %s21, %s28
    %s219 = sor.u32 %s217, %s218
    %p220 = scmp.eq.s32.totalorder %s219, 0
    %s222 = sadd.s32 %s221, 1
    %s223 = scalar_select %p220, %s221, %s222
    %p226 = pneg %p220
    %p227 = scmp.eq.s32.totalorder %s13, 3
    %p228 = por %p226, %p227
    %p229 = scmp.ne.s32.totalorder %s221, %s224
    %p230 = scmp.eq.s32.totalorder %s13, 0
    %p231 = por %p229, %p230
    %p232 = scmp.ne.s32.totalorder %s221, %s224
    %p233 = scmp.eq.s32.totalorder %s18, 3
    %p234 = por %p232, %p233
    %p235 = scmp.ne.s32.totalorder %s224, %s225
    %p236 = scmp.eq.s32.totalorder %s18, 0
    %p237 = por %p235, %p236
    %p238 = scmp.ne.s32.totalorder %s224, %s225
    %p239 = scmp.eq.s32.totalorder %s19, 3
    %p240 = por %p238, %p239
    %p242 = scmp.ne.s32.totalorder %s225, %s241
    %p243 = scmp.eq.s32.totalorder %s19, 0
    %p244 = por %p242, %p243
    %p245 = scmp.le.s32.totalorder 1, %s13
    %p246 = scmp.lt.s32.totalorder %s13, 5
    %p247 = pnand %p245, %p246
    %p248 = pneg %p247
    // Predicated region
    $region9: #{residual_forward_nchw.1} parent=5 // pred_check
      _
    $region10: #{residual_forward_nchw.1} parent=5 // pred_check_branch
      %250 = sbr.rel (%p247) target = $region12
    $region11: #{residual_forward_nchw.1} parent=5 // pred_region
      %s251 = ssub.s32 %s13, 1
      // Predicated region
      $region13: #{residual_forward_nchw.1} parent=11 // pred_check
        %p252 = pneg %p146
      $region14: #{residual_forward_nchw.1} parent=11 // pred_check_branch
        %254 = sbr.rel (%p252) target = $region16
      $region15: #{residual_forward_nchw.1} parent=11 // pred_region
        _
      $region16: #{residual_forward_nchw.1} parent=11 // pred_fallthru
        _
      // Predicated region
      $region17: #{residual_forward_nchw.1} parent=11 // pred_check
        %p255 = pneg %p167
      $region18: #{residual_forward_nchw.1} parent=11 // pred_check_branch
        %257 = sbr.rel (%p255) target = $region20
      $region19: #{residual_forward_nchw.1} parent=11 // pred_region
        _
      $region20: #{residual_forward_nchw.1} parent=11 // pred_fallthru
        _
      // Predicated region
      $region21: #{residual_forward_nchw.1} parent=11 // pred_check
        %p258 = pneg %p188
      $region22: #{residual_forward_nchw.1} parent=11 // pred_check_branch
        %260 = sbr.rel (%p258) target = $region24
      $region23: #{residual_forward_nchw.1} parent=11 // pred_region
        _
      $region24: #{residual_forward_nchw.1} parent=11 // pred_fallthru
        _
      // Predicated region
      $region25: #{residual_forward_nchw.1} parent=11 // pred_check
        %p261 = pneg %p209
      $region26: #{residual_forward_nchw.1} parent=11 // pred_check_branch
        %263 = sbr.rel (%p261) target = $region28
      $region27: #{residual_forward_nchw.1} parent=11 // pred_region
        _
      $region28: #{residual_forward_nchw.1} parent=11 // pred_fallthru
        _
    $region12: #{residual_forward_nchw.1} parent=5 // pred_fallthru
      _
    %p264 = scmp.lt.s32.totalorder %s13, 4
    // Predicated region
    $region29: #{residual_forward_nchw.1} parent=5 // pred_check
      %p265 = pneg %p264
    $region30: #{residual_forward_nchw.1} parent=5 // pred_check_branch
      %267 = sbr.rel (%p265) target = $region32
    $region31: #{residual_forward_nchw.1} parent=5 // pred_region
      // Predicated region
      $region33: #{residual_forward_nchw.1} parent=31 // pred_check
        %p268 = pneg %p47
      $region34: #{residual_forward_nchw.1} parent=31 // pred_check_branch
        %270 = sbr.rel (%p268) target = $region36
      $region35: #{residual_forward_nchw.1} parent=31 // pred_region
        %s271 = smul.u32 8, %s21
        %p272 = scmp.lt.s32.totalorder %s20, 1
        %s273 = scalar_select %p272, %s20, 1
        %p274 = scmp.lt.s32.totalorder %s271, 15
        %s275 = scalar_select %p274, %s271, 15
        %s276 = smul.addr %s275, 2
        %s277 = smul.addr %s273, 32
        %s278 = sadd.s32 %s276, %s277
        %s279 = smul.addr %s278, 8
        %s280 = scalar_lea.vmem %s0, %s279
        %s281 = smul.u32 8, %s21
      $region36: #{residual_forward_nchw.1} parent=31 // pred_fallthru
        _
      // Predicated region
      $region37: #{residual_forward_nchw.1} parent=31 // pred_check
        %p282 = pneg %p83
      $region38: #{residual_forward_nchw.1} parent=31 // pred_check_branch
        %284 = sbr.rel (%p282) target = $region40
      $region39: #{residual_forward_nchw.1} parent=31 // pred_region
        %s285 = smul.u32 %s21, 8
        %s286 = ssub.s32 %s285, 1
        %p287 = scmp.gt.s32.totalorder %s286, 0
        %s288 = scalar_select %p287, %s286, 0
        %p289 = scmp.lt.s32.totalorder %s20, 1
        %s290 = scalar_select %p289, %s20, 1
        %p291 = scmp.lt.s32.totalorder %s288, 15
        %s292 = scalar_select %p291, %s288, 15
        %s293 = smul.addr %s292, 2
        %s294 = smul.addr %s290, 32
        %s295 = sadd.s32 %s293, %s294
        %s296 = smul.addr %s295, 8
        %s297 = scalar_lea.vmem %s1, %s296
        %s298 = smul.u32 %s21, 8
        %s299 = ssub.s32 %s298, 1
        %p300 = scmp.gt.s32.totalorder %s299, 0
        %s301 = scalar_select %p300, %s299, 0
      $region40: #{residual_forward_nchw.1} parent=31 // pred_fallthru
        _
      // Predicated region
      $region41: #{residual_forward_nchw.1} parent=31 // pred_check
        %p302 = pneg %p119
      $region42: #{residual_forward_nchw.1} parent=31 // pred_check_branch
        %304 = sbr.rel (%p302) target = $region44
      $region43: #{residual_forward_nchw.1} parent=31 // pred_region
        %s305 = sadd.s32 %s21, 1
        %s306 = smul.u32 %s305, 8
        %p307 = scmp.lt.s32.totalorder %s306, 15
        %s308 = scalar_select %p307, %s306, 15
        %p309 = scmp.lt.s32.totalorder %s20, 1
        %s310 = scalar_select %p309, %s20, 1
        %p311 = scmp.lt.s32.totalorder %s308, 15
        %s312 = scalar_select %p311, %s308, 15
        %s313 = smul.addr %s312, 2
        %s314 = smul.addr %s310, 32
        %s315 = sadd.s32 %s313, %s314
        %s316 = smul.addr %s315, 8
        %s317 = scalar_lea.vmem %s2, %s316
        %s318 = sadd.s32 %s21, 1
        %s319 = smul.u32 %s318, 8
        %p320 = scmp.lt.s32.totalorder %s319, 15
        %s321 = scalar_select %p320, %s319, 15
      $region44: #{residual_forward_nchw.1} parent=31 // pred_fallthru
        _
    $region32: #{residual_forward_nchw.1} parent=5 // pred_fallthru
      _
    %p322 = scmp.le.s32.totalorder 1, %s13
    %p323 = scmp.lt.s32.totalorder %s13, 5
    %p324 = pnand %p322, %p323
    %p325 = pneg %p324
    // Predicated region
    $region45: #{residual_forward_nchw.1} parent=5 // pred_check
      _
    $region46: #{residual_forward_nchw.1} parent=5 // pred_check_branch
      %327 = sbr.rel (%p324) target = $region48
    $region47: #{residual_forward_nchw.1} parent=5 // pred_region
      %s328 = ssub.s32 %s13, 1
      %s329 = smul.u32 8, %s23
      %p330 = scmp.lt.s32.totalorder %s22, 1
      %s331 = scalar_select %p330, %s22, 1
      %p332 = scmp.lt.s32.totalorder %s329, 15
      %s333 = scalar_select %p332, %s329, 15
      %s334 = smul.addr %s333, 2
      %s335 = smul.addr %s331, 32
      %s336 = sadd.s32 %s334, %s335
      %s337 = smul.addr %s336, 8
      %s338 = scalar_lea.vmem %s0, %s337
      %p339 = pneg %p53
      %p340 = pneg %p50
      %s341 = smul.u32 %s23, 8
      %s342 = ssub.s32 %s341, 1
      %p343 = scmp.gt.s32.totalorder %s342, 0
      %s344 = scalar_select %p343, %s342, 0
      %p345 = scmp.lt.s32.totalorder %s22, 1
      %s346 = scalar_select %p345, %s22, 1
      %p347 = scmp.lt.s32.totalorder %s344, 15
      %s348 = scalar_select %p347, %s344, 15
      %s349 = smul.addr %s348, 2
      %s350 = smul.addr %s346, 32
      %s351 = sadd.s32 %s349, %s350
      %s352 = smul.addr %s351, 8
      %s353 = scalar_lea.vmem %s1, %s352
      %p354 = pneg %p89
      %p355 = pneg %p86
      %s356 = sadd.s32 %s23, 1
      %s357 = smul.u32 %s356, 8
      %p358 = scmp.lt.s32.totalorder %s357, 15
      %s359 = scalar_select %p358, %s357, 15
      %p360 = scmp.lt.s32.totalorder %s22, 1
      %s361 = scalar_select %p360, %s22, 1
      %p362 = scmp.lt.s32.totalorder %s359, 15
      %s363 = scalar_select %p362, %s359, 15
      %s364 = smul.addr %s363, 2
      %s365 = smul.addr %s361, 32
      %s366 = sadd.s32 %s364, %s365
      %s367 = smul.addr %s366, 8
      %s368 = scalar_lea.vmem %s2, %s367
      %p369 = pneg %p125
      %p370 = pneg %p122
      %p371 = pneg %p146
      %p372 = pneg %p143
      %p373 = pneg %p167
      %p374 = pneg %p164
      %p375 = pneg %p188
      %p376 = pneg %p185
      %p377 = pneg %p209
      %p378 = pneg %p206
      %p379 = pneg %p237
      %p380 = pneg %p234
      %s381 = smul.u32 8, %s23
      %p382 = scmp.lt.s32.totalorder %s22, 1
      %s383 = scalar_select %p382, %s22, 1
      %p384 = scmp.lt.s32.totalorder %s381, 15
      %s385 = scalar_select %p384, %s381, 15
      %s386 = smul.addr %s385, 2
      %s387 = smul.addr %s383, 32
      %s388 = sadd.s32 %s386, %s387
      %s389 = smul.addr %s388, 8
      %s390 = scalar_lea.vmem %s7, %s389
      %s391 = smul.u32 8, %s23
      %p392 = scmp.lt.s32.totalorder %s22, 1
      %s393 = scalar_select %p392, %s22, 1
      %p394 = scmp.lt.s32.totalorder %s391, 15
      %s395 = scalar_select %p394, %s391, 15
      %s396 = smul.addr %s395, 2
      %s397 = smul.addr %s393, 32
      %s398 = sadd.s32 %s396, %s397
      %s399 = smul.addr %s398, 8
      %s400 = scalar_lea.vmem %s0, %s399
      %s401 = smul.u32 8, %s23
      %s402 = smul.u32 %s23, 8
      %s403 = ssub.s32 %s402, 1
      %p404 = scmp.gt.s32.totalorder %s403, 0
      %s405 = scalar_select %p404, %s403, 0
      %p406 = scmp.lt.s32.totalorder %s22, 1
      %s407 = scalar_select %p406, %s22, 1
      %p408 = scmp.lt.s32.totalorder %s405, 15
      %s409 = scalar_select %p408, %s405, 15
      %s410 = smul.addr %s409, 2
      %s411 = smul.addr %s407, 32
      %s412 = sadd.s32 %s410, %s411
      %s413 = smul.addr %s412, 8
      %s414 = scalar_lea.vmem %s1, %s413
      %s415 = smul.u32 %s23, 8
      %s416 = ssub.s32 %s415, 1
      %p417 = scmp.gt.s32.totalorder %s416, 0
      %s418 = scalar_select %p417, %s416, 0
      %s419 = sadd.s32 %s23, 1
      %s420 = smul.u32 %s419, 8
      %p421 = scmp.lt.s32.totalorder %s420, 15
      %s422 = scalar_select %p421, %s420, 15
      %p423 = scmp.lt.s32.totalorder %s22, 1
      %s424 = scalar_select %p423, %s22, 1
      %p425 = scmp.lt.s32.totalorder %s422, 15
      %s426 = scalar_select %p425, %s422, 15
      %s427 = smul.addr %s426, 2
      %s428 = smul.addr %s424, 32
      %s429 = sadd.s32 %s427, %s428
      %s430 = smul.addr %s429, 8
      %s431 = scalar_lea.vmem %s2, %s430
      %s432 = sadd.s32 %s23, 1
      %s433 = smul.u32 %s432, 8
      %p434 = scmp.lt.s32.totalorder %s433, 15
      %s435 = scalar_select %p434, %s433, 15
      %s436 = smul.u32 8, %s23
      %p437 = scmp.lt.s32.totalorder %s22, 1
      %s438 = scalar_select %p437, %s22, 1
      %p439 = scmp.lt.s32.totalorder %s436, 15
      %s440 = scalar_select %p439, %s436, 15
      %s441 = smul.addr %s440, 2
      %s442 = smul.addr %s438, 32
      %s443 = sadd.s32 %s441, %s442
      %s444 = smul.addr %s443, 8
      %s445 = scalar_lea.vmem %s7, %s444
      %s446 = smul.u32 8, %s23
      %v447 = vld [vmem:[%s414] sm:$0xff]
      %v448 = vld [vmem:[%s414 + $0x8] sm:$0xff]
      %v449 = vld [vmem:[%s400] sm:$0xff]
      %v450 = vld [vmem:[%s400 + $0x8] sm:$0xff]
      %v451 = vld [vmem:[%s400 + $0x10] sm:$0xff]
      %v452 = vld [vmem:[%s400 + $0x18] sm:$0xff]
      %v453 = vld [vmem:[%s400 + $0x20] sm:$0xff]
      %v454 = vld [vmem:[%s400 + $0x28] sm:$0xff]
      %v455 = vld [vmem:[%s400 + $0x30] sm:$0xff]
      %v456 = vld [vmem:[%s400 + $0x38] sm:$0xff]
      %v457 = vld [vmem:[%s400 + $0x40] sm:$0xff]
      %v458 = vld [vmem:[%s400 + $0x48] sm:$0xff]
      %v459 = vld [vmem:[%s400 + $0x50] sm:$0xff]
      %v460 = vld [vmem:[%s400 + $0x58] sm:$0xff]
      %v461 = vld [vmem:[%s400 + $0x60] sm:$0xff]
      %v462 = vld [vmem:[%s400 + $0x68] sm:$0xff]
      %v463 = vld [vmem:[%s400 + $0x70] sm:$0xff]
      %v464 = vld [vmem:[%s400 + $0x78] sm:$0xff]
      %v465 = vld [vmem:[%s431] sm:$0xff]
      %v466 = vld [vmem:[%s431 + $0x8] sm:$0xff]
      %v467 = vld [vmem:[%s3] sm:$0xff]
      %v468 = vld [vmem:[%s3 + $0x8] sm:$0xff]
      %v469 = vld [vmem:[%s3 + $0x10] sm:$0xff]
      %v470 = vld [vmem:[%s3 + $0x18] sm:$0xff]
      %v471 = vld [vmem:[%s3 + $0x20] sm:$0xff]
      %v472 = vld [vmem:[%s3 + $0x28] sm:$0xff]
      %v473 = vld [vmem:[%s3 + $0x30] sm:$0xff]
      %v474 = vld [vmem:[%s3 + $0x38] sm:$0xff]
      %v475 = vld [vmem:[%s3 + $0x40] sm:$0xff]
      %v476 = vld [vmem:[%s3 + $0x48] sm:$0xff]
      %v477 = vld [vmem:[%s3 + $0x50] sm:$0xff]
      %v478 = vld [vmem:[%s3 + $0x58] sm:$0xff]
      %v479 = vld [vmem:[%s3 + $0x60] sm:$0xff]
      %v480 = vld [vmem:[%s3 + $0x68] sm:$0xff]
      %v481 = vld [vmem:[%s3 + $0x70] sm:$0xff]
      %v482 = vld [vmem:[%s3 + $0x78] sm:$0xff]
      %v483 = vld [vmem:[%s4] sm:$0x1]
      %v485 = vlaneseq
      %v486 = vshrl.u32 %v485, 7
      %v487 = vsub.s32 0, %v486
      %v488 = vrot.slane %v483, %v487
      %490 = vmatprep.subr.mxu0 0.0
      %491 = vmatpush1.msra.mxu0 %v482
      %492 = vmatprep.subr.mxu0 0.0
      %493 = vmatpush1.msra.mxu0 %v481
      %494 = vmatprep.subr.mxu0 0.0
      %495 = vmatpush1.msra.mxu0 %v480
      %496 = vmatprep.subr.mxu0 0.0
      %497 = vmatpush1.msra.mxu0 %v479
      %498 = vmatprep.subr.mxu0 0.0
      %499 = vmatpush1.msra.mxu0 %v478
      %500 = vmatprep.subr.mxu0 0.0
      %501 = vmatpush1.msra.mxu0 %v477
      %502 = vmatprep.subr.mxu0 0.0
      %503 = vmatpush1.msra.mxu0 %v476
      %504 = vmatprep.subr.mxu0 0.0
      %505 = vmatpush1.msra.mxu0 %v475
      %506 = vmatprep.subr.mxu0 0.0
      %507 = vmatpush1.msra.mxu0 %v474
      %508 = vmatprep.subr.mxu0 0.0
      %509 = vmatpush1.msra.mxu0 %v473
      %510 = vmatprep.subr.mxu0 0.0
      %511 = vmatpush1.msra.mxu0 %v472
      %512 = vmatprep.subr.mxu0 0.0
      %513 = vmatpush1.msra.mxu0 %v471
      %514 = vmatprep.subr.mxu0 0.0
      %515 = vmatpush1.msra.mxu0 %v470
      %516 = vmatprep.subr.mxu0 0.0
      %517 = vmatpush1.msra.mxu0 %v469
      %518 = vmatprep.subr.mxu0 0.0
      %519 = vmatpush1.msra.mxu0 %v468
      %520 = vmatprep.subr.mxu0 0.0
      %521 = vmatpush1.msra.mxu0 %v467
      %522 = vmatprep.subr.mxu0 0.0
      %523 = vmatpush2.msra.mxu0 0.0
      %524 = vmatprep.subr.mxu0 0.0
      %525 = vmatpush2.msra.mxu0 0.0
      %526 = vmatprep.subr.mxu0 0.0
      %527 = vmatpush2.msra.mxu0 0.0
      %528 = vmatprep.subr.mxu0 0.0
      %529 = vmatpush2.msra.mxu0 0.0
      %530 = vmatprep.subr.mxu0 0.0
      %531 = vmatpush2.msra.mxu0 0.0
      %532 = vmatprep.subr.mxu0 0.0
      %533 = vmatpush2.msra.mxu0 0.0
      %534 = vmatprep.subr.mxu0 0.0
      %535 = vmatpush2.msra.mxu0 0.0
      %536 = vmatprep.subr.mxu0 0.0
      %537 = vmatpush2.msra.mxu0 0.0
      %538 = vmatprep.subr.mxu0 0.0
      %539 = vmatpush2.msra.mxu0 0.0
      %540 = vmatprep.subr.mxu0 0.0
      %541 = vmatpush2.msra.mxu0 0.0
      %542 = vmatprep.subr.mxu0 0.0
      %543 = vmatpush2.msra.mxu0 0.0
      %544 = vmatprep.subr.mxu0 0.0
      %545 = vmatpush2.msra.mxu0 0.0
      %546 = vmatprep.subr.mxu0 0.0
      %547 = vmatpush2.msra.mxu0 0.0
      %548 = vmatprep.subr.mxu0 0.0
      %549 = vmatpush2.msra.mxu0 0.0
      %550 = vmatprep.subr.mxu0 0.0
      %551 = vmatpush2.msra.mxu0 0.0
      %552 = vmatprep.subr.mxu0 0.0
      %553 = vmatpush2.msra.mxu0 0.0
      %554 = vmatprep.mubr.f32.mxu0 0.0
      %555 = vmatmul.mubr.f32.gmra.mxu0 %v447
      %v556 = vpop.f32.mrf.mxu0
      %v557 = vadd.f32 %v488, %v556
      %v558 = vpop.f32.mrf.mxu0
      %559 = vmatprep.mubr.f32.mxu0 0.0
      %560 = vmatmul.mubr.f32.gmra.mxu0 %v448
      %v561 = vpop.f32.mrf.mxu0
      %v562 = vadd.f32 %v488, %v561
      %v563 = vpop.f32.mrf.mxu0
      %564 = vmatprep.mubr.f32.mxu0 0.0
      %565 = vmatmul.mubr.f32.gmra.mxu0 %v449
      %v566 = vpop.f32.mrf.mxu0
      %v567 = vadd.f32 %v488, %v566
      %v568 = vpop.f32.mrf.mxu0
      %569 = vmatprep.mubr.f32.mxu0 0.0
      %570 = vmatmul.mubr.f32.gmra.mxu0 %v450
      %v571 = vpop.f32.mrf.mxu0
      %v572 = vadd.f32 %v488, %v571
      %v573 = vpop.f32.mrf.mxu0
      %574 = vmatprep.mubr.f32.mxu0 0.0
      %575 = vmatmul.mubr.f32.gmra.mxu0 %v451
      %v576 = vpop.f32.mrf.mxu0
      %v577 = vadd.f32 %v488, %v576
      %v578 = vpop.f32.mrf.mxu0
      %579 = vmatprep.mubr.f32.mxu0 0.0
      %580 = vmatmul.mubr.f32.gmra.mxu0 %v452
      %v581 = vpop.f32.mrf.mxu0
      %v582 = vadd.f32 %v488, %v581
      %v583 = vpop.f32.mrf.mxu0
      %584 = vmatprep.mubr.f32.mxu0 0.0
      %585 = vmatmul.mubr.f32.gmra.mxu0 %v453
      %v586 = vpop.f32.mrf.mxu0
      %v587 = vadd.f32 %v488, %v586
      %v588 = vpop.f32.mrf.mxu0
      %589 = vmatprep.mubr.f32.mxu0 0.0
      %590 = vmatmul.mubr.f32.gmra.mxu0 %v454
      %v591 = vpop.f32.mrf.mxu0
      %v592 = vadd.f32 %v488, %v591
      %v593 = vpop.f32.mrf.mxu0
      %594 = vmatprep.mubr.f32.mxu0 0.0
      %595 = vmatmul.mubr.f32.gmra.mxu0 %v455
      %v596 = vpop.f32.mrf.mxu0
      %v597 = vadd.f32 %v488, %v596
      %v598 = vpop.f32.mrf.mxu0
      %599 = vmatprep.mubr.f32.mxu0 0.0
      %600 = vmatmul.mubr.f32.gmra.mxu0 %v456
      %v601 = vpop.f32.mrf.mxu0
      %v602 = vadd.f32 %v488, %v601
      %v603 = vpop.f32.mrf.mxu0
      %604 = vmatprep.mubr.f32.mxu0 0.0
      %605 = vmatmul.mubr.f32.gmra.mxu0 %v457
      %v606 = vpop.f32.mrf.mxu0
      %v607 = vadd.f32 %v488, %v606
      %v608 = vpop.f32.mrf.mxu0
      %609 = vmatprep.mubr.f32.mxu0 0.0
      %610 = vmatmul.mubr.f32.gmra.mxu0 %v458
      %v611 = vpop.f32.mrf.mxu0
      %v612 = vadd.f32 %v488, %v611
      %v613 = vpop.f32.mrf.mxu0
      %614 = vmatprep.mubr.f32.mxu0 0.0
      %615 = vmatmul.mubr.f32.gmra.mxu0 %v459
      %v616 = vpop.f32.mrf.mxu0
      %v617 = vadd.f32 %v488, %v616
      %v618 = vpop.f32.mrf.mxu0
      %619 = vmatprep.mubr.f32.mxu0 0.0
      %620 = vmatmul.mubr.f32.gmra.mxu0 %v460
      %v621 = vpop.f32.mrf.mxu0
      %v622 = vadd.f32 %v488, %v621
      %v623 = vpop.f32.mrf.mxu0
      %624 = vmatprep.mubr.f32.mxu0 0.0
      %625 = vmatmul.mubr.f32.gmra.mxu0 %v461
      %v626 = vpop.f32.mrf.mxu0
      %v627 = vadd.f32 %v488, %v626
      %v628 = vpop.f32.mrf.mxu0
      %629 = vmatprep.mubr.f32.mxu0 0.0
      %630 = vmatmul.mubr.f32.gmra.mxu0 %v462
      %v631 = vpop.f32.mrf.mxu0
      %v632 = vadd.f32 %v488, %v631
      %v633 = vpop.f32.mrf.mxu0
      %634 = vmatprep.mubr.f32.mxu0 0.0
      %635 = vmatmul.mubr.f32.gmra.mxu0 %v463
      %v636 = vpop.f32.mrf.mxu0
      %v637 = vadd.f32 %v488, %v636
      %v638 = vpop.f32.mrf.mxu0
      %639 = vmatprep.mubr.f32.mxu0 0.0
      %640 = vmatmul.mubr.f32.gmra.mxu0 %v464
      %v641 = vpop.f32.mrf.mxu0
      %v642 = vadd.f32 %v488, %v641
      %v643 = vpop.f32.mrf.mxu0
      %644 = vmatprep.mubr.f32.mxu0 0.0
      %645 = vmatmul.mubr.f32.gmra.mxu0 %v465
      %v646 = vpop.f32.mrf.mxu0
      %v647 = vadd.f32 %v488, %v646
      %v648 = vpop.f32.mrf.mxu0
      %649 = vmatprep.mubr.f32.mxu0 0.0
      %650 = vmatmul.mubr.f32.gmra.mxu0 %v466
      %v651 = vpop.f32.mrf.mxu0
      %v652 = vadd.f32 %v488, %v651
      %v653 = vpop.f32.mrf.mxu0
      %654 = vdwg.mxu0
      %vm655 = vcmp.gt.f32.partialorder %v557, 0.0
      %vm656 = vcmp.gt.f32.partialorder %v562, 0.0
      %vm657 = vcmp.gt.f32.partialorder %v567, 0.0
      %vm658 = vcmp.gt.f32.partialorder %v572, 0.0
      %vm659 = vcmp.gt.f32.partialorder %v577, 0.0
      %vm660 = vcmp.gt.f32.partialorder %v582, 0.0
      %vm661 = vcmp.gt.f32.partialorder %v587, 0.0
      %vm662 = vcmp.gt.f32.partialorder %v592, 0.0
      %vm663 = vcmp.gt.f32.partialorder %v597, 0.0
      %vm664 = vcmp.gt.f32.partialorder %v602, 0.0
      %vm665 = vcmp.gt.f32.partialorder %v607, 0.0
      %vm666 = vcmp.gt.f32.partialorder %v612, 0.0
      %vm667 = vcmp.gt.f32.partialorder %v617, 0.0
      %vm668 = vcmp.gt.f32.partialorder %v622, 0.0
      %vm669 = vcmp.gt.f32.partialorder %v627, 0.0
      %vm670 = vcmp.gt.f32.partialorder %v632, 0.0
      %vm671 = vcmp.gt.f32.partialorder %v637, 0.0
      %vm672 = vcmp.gt.f32.partialorder %v642, 0.0
      %vm673 = vcmp.gt.f32.partialorder %v647, 0.0
      %vm674 = vcmp.gt.f32.partialorder %v652, 0.0
      %v675 = vmul.f32 %v557, 0.1
      %v676 = vmul.f32 %v562, 0.1
      %v677 = vmul.f32 %v567, 0.1
      %v678 = vmul.f32 %v572, 0.1
      %v679 = vmul.f32 %v577, 0.1
      %v680 = vmul.f32 %v582, 0.1
      %v681 = vmul.f32 %v587, 0.1
      %v682 = vmul.f32 %v592, 0.1
      %v683 = vmul.f32 %v597, 0.1
      %v684 = vmul.f32 %v602, 0.1
      %v685 = vmul.f32 %v607, 0.1
      %v686 = vmul.f32 %v612, 0.1
      %v687 = vmul.f32 %v617, 0.1
      %v688 = vmul.f32 %v622, 0.1
      %v689 = vmul.f32 %v627, 0.1
      %v690 = vmul.f32 %v632, 0.1
      %v691 = vmul.f32 %v637, 0.1
      %v692 = vmul.f32 %v642, 0.1
      %v693 = vmul.f32 %v647, 0.1
      %v694 = vmul.f32 %v652, 0.1
      %v695 = vsel %vm655, %v557, %v675
      %v696 = vsel %vm656, %v562, %v676
      %v697 = vsel %vm657, %v567, %v677
      %v698 = vsel %vm658, %v572, %v678
      %v699 = vsel %vm659, %v577, %v679
      %v700 = vsel %vm660, %v582, %v680
      %v701 = vsel %vm661, %v587, %v681
      %v702 = vsel %vm662, %v592, %v682
      %v703 = vsel %vm663, %v597, %v683
      %v704 = vsel %vm664, %v602, %v684
      %v705 = vsel %vm665, %v607, %v685
      %v706 = vsel %vm666, %v612, %v686
      %v707 = vsel %vm667, %v617, %v687
      %v708 = vsel %vm668, %v622, %v688
      %v709 = vsel %vm669, %v627, %v689
      %v710 = vsel %vm670, %v632, %v690
      %v711 = vsel %vm671, %v637, %v691
      %v712 = vsel %vm672, %v642, %v692
      %v713 = vsel %vm673, %v647, %v693
      %v714 = vsel %vm674, %v652, %v694
      %715 = vst [vmem:[#allocation2] sm:$0xff] %v695
      %716 = vst [vmem:[#allocation2 + $0x8] sm:$0xff] %v696
      %717 = vst [vmem:[#allocation2 + $0x10] sm:$0xff] %v697
      %718 = vst [vmem:[#allocation2 + $0x18] sm:$0xff] %v698
      %719 = vst [vmem:[#allocation2 + $0x20] sm:$0xff] %v699
      %720 = vst [vmem:[#allocation2 + $0x28] sm:$0xff] %v700
      %721 = vst [vmem:[#allocation2 + $0x30] sm:$0xff] %v701
      %722 = vst [vmem:[#allocation2 + $0x38] sm:$0xff] %v702
      %723 = vst [vmem:[#allocation2 + $0x40] sm:$0xff] %v703
      %724 = vst [vmem:[#allocation2 + $0x48] sm:$0xff] %v704
      %725 = vst [vmem:[#allocation2 + $0x50] sm:$0xff] %v705
      %726 = vst [vmem:[#allocation2 + $0x58] sm:$0xff] %v706
      %727 = vst [vmem:[#allocation2 + $0x60] sm:$0xff] %v707
      %728 = vst [vmem:[#allocation2 + $0x68] sm:$0xff] %v708
      %729 = vst [vmem:[#allocation2 + $0x70] sm:$0xff] %v709
      %730 = vst [vmem:[#allocation2 + $0x78] sm:$0xff] %v710
      %731 = vst [vmem:[#allocation2 + $0x80] sm:$0xff] %v711
      %732 = vst [vmem:[#allocation2 + $0x88] sm:$0xff] %v712
      %733 = vst [vmem:[#allocation2 + $0x90] sm:$0xff] %v713
      %734 = vst [vmem:[#allocation2 + $0x98] sm:$0xff] %v714
      %p735 = scmp.eq.s32.totalorder %s23, 0
      // Predicated region
      $region49: #{residual_forward_nchw.1} parent=47 // pred_check
        %p736 = pneg %p735
      $region50: #{residual_forward_nchw.1} parent=47 // pred_check_branch
        %738 = sbr.rel (%p736) target = $region52
      $region51: #{residual_forward_nchw.1} parent=47 // pred_region
        %739 = vst [vmem:[#allocation2] sm:$0xff] 0.0
        %740 = vst [vmem:[#allocation2 + $0x8] sm:$0xff] 0.0
      $region52: #{residual_forward_nchw.1} parent=47 // pred_fallthru
        _
      %p741 = scmp.eq.s32.totalorder %s23, 1
      // Predicated region
      $region53: #{residual_forward_nchw.1} parent=47 // pred_check
        %p742 = pneg %p741
      $region54: #{residual_forward_nchw.1} parent=47 // pred_check_branch
        %744 = sbr.rel (%p742) target = $region56
      $region55: #{residual_forward_nchw.1} parent=47 // pred_region
        %s745 = scalar_lea.vmem [#allocation2], 144
        %746 = vst [vmem:[%s745] sm:$0xff] 0.0
        %747 = vst [vmem:[%s745 + $0x8] sm:$0xff] 0.0
      $region56: #{residual_forward_nchw.1} parent=47 // pred_fallthru
        _
      %v748 = vld [vmem:[#allocation2] sm:$0xff]
      %v749 = vld [vmem:[#allocation2 + $0x8] sm:$0xff]
      %v750 = vld [vmem:[#allocation2 + $0x10] sm:$0xff]
      %v751 = vld [vmem:[#allocation2 + $0x18] sm:$0xff]
      %v752 = vld [vmem:[#allocation2 + $0x20] sm:$0xff]
      %v753 = vld [vmem:[#allocation2 + $0x28] sm:$0xff]
      %v754 = vld [vmem:[#allocation2 + $0x30] sm:$0xff]
      %v755 = vld [vmem:[#allocation2 + $0x38] sm:$0xff]
      %v756 = vld [vmem:[#allocation2 + $0x40] sm:$0xff]
      %v757 = vld [vmem:[#allocation2 + $0x48] sm:$0xff]
      %v758 = vld [vmem:[#allocation2 + $0x50] sm:$0xff]
      %v759 = vld [vmem:[#allocation2 + $0x58] sm:$0xff]
      %v760 = vld [vmem:[#allocation2 + $0x60] sm:$0xff]
      %v761 = vld [vmem:[#allocation2 + $0x68] sm:$0xff]
      %v762 = vld [vmem:[#allocation2 + $0x70] sm:$0xff]
      %v763 = vld [vmem:[#allocation2 + $0x78] sm:$0xff]
      %v764 = vld [vmem:[#allocation2 + $0x80] sm:$0xff]
      %v765 = vld [vmem:[#allocation2 + $0x88] sm:$0xff]
      %v766 = vld [vmem:[#allocation2 + $0x90] sm:$0xff]
      %v767 = vld [vmem:[#allocation2 + $0x98] sm:$0xff]
      %vm788 = vcmask 1040384
      %v789 = vrot.slane %v748, 7
      %v790 = vrot.slane %v749, 7
      %v791 = vsel %vm788, %v789, %v790
      %v792 = vrot.slane %v750, 7
      %v793 = vrot.slane %v751, 7
      %v794 = vsel %vm788, %v792, %v793
      %v795 = vrot.slane %v752, 7
      %v796 = vrot.slane %v753, 7
      %v797 = vsel %vm788, %v795, %v796
      %v798 = vrot.slane %v754, 7
      %v799 = vrot.slane %v755, 7
      %v800 = vsel %vm788, %v798, %v799
      %v801 = vrot.slane %v756, 7
      %v802 = vrot.slane %v757, 7
      %v803 = vsel %vm788, %v801, %v802
      %v804 = vrot.slane %v758, 7
      %v805 = vrot.slane %v759, 7
      %v806 = vsel %vm788, %v804, %v805
      %v807 = vrot.slane %v760, 7
      %v808 = vrot.slane %v761, 7
      %v809 = vsel %vm788, %v807, %v808
      %v810 = vrot.slane %v762, 7
      %v811 = vrot.slane %v763, 7
      %v812 = vsel %vm788, %v810, %v811
      %v813 = vrot.slane %v764, 7
      %v814 = vrot.slane %v765, 7
      %v815 = vsel %vm788, %v813, %v814
      %v816 = vrot.slane %v766, 7
      %v817 = vrot.slane %v767, 7
      %v818 = vsel %vm788, %v816, %v817
      %v839 = vsel %vm788, 0.0, %v789
      %v840 = vsel %vm788, 0.0, %v792
      %v841 = vsel %vm788, 0.0, %v795
      %v842 = vsel %vm788, 0.0, %v798
      %v843 = vsel %vm788, 0.0, %v801
      %v844 = vsel %vm788, 0.0, %v804
      %v845 = vsel %vm788, 0.0, %v807
      %v846 = vsel %vm788, 0.0, %v810
      %v847 = vsel %vm788, 0.0, %v813
      %v848 = vsel %vm788, 0.0, %v816
      %vm849 = vcmask 1046528
      %v850 = vrot.slane %v748, 1
      %v851 = vrot.slane %v749, 1
      %v852 = vsel %vm849, %v850, %v851
      %v853 = vrot.slane %v750, 1
      %v854 = vrot.slane %v751, 1
      %v855 = vsel %vm849, %v853, %v854
      %v856 = vrot.slane %v752, 1
      %v857 = vrot.slane %v753, 1
      %v858 = vsel %vm849, %v856, %v857
      %v859 = vrot.slane %v754, 1
      %v860 = vrot.slane %v755, 1
      %v861 = vsel %vm849, %v859, %v860
      %v862 = vrot.slane %v756, 1
      %v863 = vrot.slane %v757, 1
      %v864 = vsel %vm849, %v862, %v863
      %v865 = vrot.slane %v758, 1
      %v866 = vrot.slane %v759, 1
      %v867 = vsel %vm849, %v865, %v866
      %v868 = vrot.slane %v760, 1
      %v869 = vrot.slane %v761, 1
      %v870 = vsel %vm849, %v868, %v869
      %v871 = vrot.slane %v762, 1
      %v872 = vrot.slane %v763, 1
      %v873 = vsel %vm849, %v871, %v872
      %v874 = vrot.slane %v764, 1
      %v875 = vrot.slane %v765, 1
      %v876 = vsel %vm849, %v874, %v875
      %v877 = vrot.slane %v766, 1
      %v878 = vrot.slane %v767, 1
      %v879 = vsel %vm849, %v877, %v878
      %v900 = vsel %vm849, %v851, 0.0
      %v901 = vsel %vm849, %v854, 0.0
      %v902 = vsel %vm849, %v857, 0.0
      %v903 = vsel %vm849, %v860, 0.0
      %v904 = vsel %vm849, %v863, 0.0
      %v905 = vsel %vm849, %v866, 0.0
      %v906 = vsel %vm849, %v869, 0.0
      %v907 = vsel %vm849, %v872, 0.0
      %v908 = vsel %vm849, %v875, 0.0
      %v909 = vsel %vm849, %v878, 0.0
      %v910 = vld [vmem:[%s5] sm:$0xff]
      %v911 = vld [vmem:[%s5 + $0x8] sm:$0xff]
      %v912 = vld [vmem:[%s5 + $0x10] sm:$0xff]
      %v913 = vld [vmem:[%s5 + $0x18] sm:$0xff]
      %v914 = vld [vmem:[%s5 + $0x20] sm:$0xff]
      %v915 = vld [vmem:[%s5 + $0x28] sm:$0xff]
      %v916 = vld [vmem:[%s5 + $0x30] sm:$0xff]
      %v917 = vld [vmem:[%s5 + $0x38] sm:$0xff]
      %v918 = vld [vmem:[%s5 + $0x40] sm:$0xff]
      %v919 = vld [vmem:[%s5 + $0x48] sm:$0xff]
      %v920 = vld [vmem:[%s5 + $0x50] sm:$0xff]
      %v921 = vld [vmem:[%s5 + $0x58] sm:$0xff]
      %v922 = vld [vmem:[%s5 + $0x60] sm:$0xff]
      %v923 = vld [vmem:[%s5 + $0x68] sm:$0xff]
      %v924 = vld [vmem:[%s5 + $0x70] sm:$0xff]
      %v925 = vld [vmem:[%s5 + $0x78] sm:$0xff]
      %v926 = vld [vmem:[%s5 + $0x80] sm:$0xff]
      %v927 = vld [vmem:[%s5 + $0x88] sm:$0xff]
      %v928 = vld [vmem:[%s5 + $0x90] sm:$0xff]
      %v929 = vld [vmem:[%s5 + $0x98] sm:$0xff]
      %v930 = vld [vmem:[%s5 + $0xa0] sm:$0xff]
      %v931 = vld [vmem:[%s5 + $0xa8] sm:$0xff]
      %v932 = vld [vmem:[%s5 + $0xb0] sm:$0xff]
      %v933 = vld [vmem:[%s5 + $0xb8] sm:$0xff]
      %v934 = vld [vmem:[%s5 + $0xc0] sm:$0xff]
      %v935 = vld [vmem:[%s5 + $0xc8] sm:$0xff]
      %v936 = vld [vmem:[%s5 + $0xd0] sm:$0xff]
      %v937 = vld [vmem:[%s5 + $0xd8] sm:$0xff]
      %v938 = vld [vmem:[%s5 + $0xe0] sm:$0xff]
      %v939 = vld [vmem:[%s5 + $0xe8] sm:$0xff]
      %v940 = vld [vmem:[%s5 + $0xf0] sm:$0xff]
      %v941 = vld [vmem:[%s5 + $0xf8] sm:$0xff]
      %v942 = vld [vmem:[%s5 + $0x100] sm:$0xff]
      %v943 = vld [vmem:[%s5 + $0x108] sm:$0xff]
      %v944 = vld [vmem:[%s5 + $0x110] sm:$0xff]
      %v945 = vld [vmem:[%s5 + $0x118] sm:$0xff]
      %v946 = vld [vmem:[%s5 + $0x120] sm:$0xff]
      %v947 = vld [vmem:[%s5 + $0x128] sm:$0xff]
      %v948 = vld [vmem:[%s5 + $0x130] sm:$0xff]
      %v949 = vld [vmem:[%s5 + $0x138] sm:$0xff]
      %v950 = vld [vmem:[%s5 + $0x140] sm:$0xff]
      %v951 = vld [vmem:[%s5 + $0x148] sm:$0xff]
      %v952 = vld [vmem:[%s5 + $0x150] sm:$0xff]
      %v953 = vld [vmem:[%s5 + $0x158] sm:$0xff]
      %v954 = vld [vmem:[%s5 + $0x160] sm:$0xff]
      %v955 = vld [vmem:[%s5 + $0x168] sm:$0xff]
      %v956 = vld [vmem:[%s5 + $0x170] sm:$0xff]
      %v957 = vld [vmem:[%s5 + $0x178] sm:$0xff]
      %s958 = scalar_lea.vmem %s5, 384
      %v959 = vld [vmem:[%s958] sm:$0xff]
      %v960 = vld [vmem:[%s958 + $0x8] sm:$0xff]
      %v961 = vld [vmem:[%s958 + $0x10] sm:$0xff]
      %v962 = vld [vmem:[%s958 + $0x18] sm:$0xff]
      %v963 = vld [vmem:[%s958 + $0x20] sm:$0xff]
      %v964 = vld [vmem:[%s958 + $0x28] sm:$0xff]
      %v965 = vld [vmem:[%s958 + $0x30] sm:$0xff]
      %v966 = vld [vmem:[%s958 + $0x38] sm:$0xff]
      %v967 = vld [vmem:[%s958 + $0x40] sm:$0xff]
      %v968 = vld [vmem:[%s958 + $0x48] sm:$0xff]
      %v969 = vld [vmem:[%s958 + $0x50] sm:$0xff]
      %v970 = vld [vmem:[%s958 + $0x58] sm:$0xff]
      %v971 = vld [vmem:[%s958 + $0x60] sm:$0xff]
      %v972 = vld [vmem:[%s958 + $0x68] sm:$0xff]
      %v973 = vld [vmem:[%s958 + $0x70] sm:$0xff]
      %v974 = vld [vmem:[%s958 + $0x78] sm:$0xff]
      %v975 = vld [vmem:[%s958 + $0x80] sm:$0xff]
      %v976 = vld [vmem:[%s958 + $0x88] sm:$0xff]
      %v977 = vld [vmem:[%s958 + $0x90] sm:$0xff]
      %v978 = vld [vmem:[%s958 + $0x98] sm:$0xff]
      %v979 = vld [vmem:[%s958 + $0xa0] sm:$0xff]
      %v980 = vld [vmem:[%s958 + $0xa8] sm:$0xff]
      %v981 = vld [vmem:[%s958 + $0xb0] sm:$0xff]
      %v982 = vld [vmem:[%s958 + $0xb8] sm:$0xff]
      %v983 = vld [vmem:[%s958 + $0xc0] sm:$0xff]
      %v984 = vld [vmem:[%s958 + $0xc8] sm:$0xff]
      %v985 = vld [vmem:[%s958 + $0xd0] sm:$0xff]
      %v986 = vld [vmem:[%s958 + $0xd8] sm:$0xff]
      %v987 = vld [vmem:[%s958 + $0xe0] sm:$0xff]
      %v988 = vld [vmem:[%s958 + $0xe8] sm:$0xff]
      %v989 = vld [vmem:[%s958 + $0xf0] sm:$0xff]
      %v990 = vld [vmem:[%s958 + $0xf8] sm:$0xff]
      %v991 = vld [vmem:[%s958 + $0x100] sm:$0xff]
      %v992 = vld [vmem:[%s958 + $0x108] sm:$0xff]
      %v993 = vld [vmem:[%s958 + $0x110] sm:$0xff]
      %v994 = vld [vmem:[%s958 + $0x118] sm:$0xff]
      %v995 = vld [vmem:[%s958 + $0x120] sm:$0xff]
      %v996 = vld [vmem:[%s958 + $0x128] sm:$0xff]
      %v997 = vld [vmem:[%s958 + $0x130] sm:$0xff]
      %v998 = vld [vmem:[%s958 + $0x138] sm:$0xff]
      %v999 = vld [vmem:[%s958 + $0x140] sm:$0xff]
      %v1000 = vld [vmem:[%s958 + $0x148] sm:$0xff]
      %v1001 = vld [vmem:[%s958 + $0x150] sm:$0xff]
      %v1002 = vld [vmem:[%s958 + $0x158] sm:$0xff]
      %v1003 = vld [vmem:[%s958 + $0x160] sm:$0xff]
      %v1004 = vld [vmem:[%s958 + $0x168] sm:$0xff]
      %v1005 = vld [vmem:[%s958 + $0x170] sm:$0xff]
      %v1006 = vld [vmem:[%s958 + $0x178] sm:$0xff]
      %1007 = vmatprep.subr.mxu0 0.0
      %1008 = vmatpush1.msra.mxu0 %v974
      %1009 = vmatprep.subr.mxu0 0.0
      %1010 = vmatpush1.msra.mxu0 %v973
      %1011 = vmatprep.subr.mxu0 0.0
      %1012 = vmatpush1.msra.mxu0 %v972
      %1013 = vmatprep.subr.mxu0 0.0
      %1014 = vmatpush1.msra.mxu0 %v971
      %1015 = vmatprep.subr.mxu0 0.0
      %1016 = vmatpush1.msra.mxu0 %v970
      %1017 = vmatprep.subr.mxu0 0.0
      %1018 = vmatpush1.msra.mxu0 %v969
      %1019 = vmatprep.subr.mxu0 0.0
      %1020 = vmatpush1.msra.mxu0 %v968
      %1021 = vmatprep.subr.mxu0 0.0
      %1022 = vmatpush1.msra.mxu0 %v967
      %1023 = vmatprep.subr.mxu0 0.0
      %1024 = vmatpush1.msra.mxu0 %v966
      %1025 = vmatprep.subr.mxu0 0.0
      %1026 = vmatpush1.msra.mxu0 %v965
      %1027 = vmatprep.subr.mxu0 0.0
      %1028 = vmatpush1.msra.mxu0 %v964
      %1029 = vmatprep.subr.mxu0 0.0
      %1030 = vmatpush1.msra.mxu0 %v963
      %1031 = vmatprep.subr.mxu0 0.0
      %1032 = vmatpush1.msra.mxu0 %v962
      %1033 = vmatprep.subr.mxu0 0.0
      %1034 = vmatpush1.msra.mxu0 %v961
      %1035 = vmatprep.subr.mxu0 0.0
      %1036 = vmatpush1.msra.mxu0 %v960
      %1037 = vmatprep.subr.mxu0 0.0
      %1038 = vmatpush1.msra.mxu0 %v959
      %1039 = vmatprep.subr.mxu0 0.0
      %1040 = vmatpush2.msra.mxu0 %v990
      %1041 = vmatprep.subr.mxu0 0.0
      %1042 = vmatpush2.msra.mxu0 %v989
      %1043 = vmatprep.subr.mxu0 0.0
      %1044 = vmatpush2.msra.mxu0 %v988
      %1045 = vmatprep.subr.mxu0 0.0
      %1046 = vmatpush2.msra.mxu0 %v987
      %1047 = vmatprep.subr.mxu0 0.0
      %1048 = vmatpush2.msra.mxu0 %v986
      %1049 = vmatprep.subr.mxu0 0.0
      %1050 = vmatpush2.msra.mxu0 %v985
      %1051 = vmatprep.subr.mxu0 0.0
      %1052 = vmatpush2.msra.mxu0 %v984
      %1053 = vmatprep.subr.mxu0 0.0
      %1054 = vmatpush2.msra.mxu0 %v983
      %1055 = vmatprep.subr.mxu0 0.0
      %1056 = vmatpush2.msra.mxu0 %v982
      %1057 = vmatprep.subr.mxu0 0.0
      %1058 = vmatpush2.msra.mxu0 %v981
      %1059 = vmatprep.subr.mxu0 0.0
      %1060 = vmatpush2.msra.mxu0 %v980
      %1061 = vmatprep.subr.mxu0 0.0
      %1062 = vmatpush2.msra.mxu0 %v979
      %1063 = vmatprep.subr.mxu0 0.0
      %1064 = vmatpush2.msra.mxu0 %v978
      %1065 = vmatprep.subr.mxu0 0.0
      %1066 = vmatpush2.msra.mxu0 %v977
      %1067 = vmatprep.subr.mxu0 0.0
      %1068 = vmatpush2.msra.mxu0 %v976
      %1069 = vmatprep.subr.mxu0 0.0
      %1070 = vmatpush2.msra.mxu0 %v975
      %1071 = vmatprep.mubr.f32.mxu0 %v750
      %1072 = vmatmul.mubr.f32.gmra.mxu0 %v840
      %v1073 = vpop.f32.mrf.mxu0
      %v1074 = vadd.f32 0.0, %v1073
      %v1075 = vpop.f32.mrf.mxu0
      %1076 = vmatprep.mubr.f32.mxu0 %v751
      %1077 = vmatmul.mubr.f32.gmra.mxu0 %v794
      %v1078 = vpop.f32.mrf.mxu0
      %v1079 = vadd.f32 0.0, %v1078
      %v1080 = vpop.f32.mrf.mxu0
      %1081 = vmatprep.mubr.f32.mxu0 %v752
      %1082 = vmatmul.mubr.f32.gmra.mxu0 %v841
      %v1083 = vpop.f32.mrf.mxu0
      %v1084 = vadd.f32 0.0, %v1083
      %v1085 = vpop.f32.mrf.mxu0
      %1086 = vmatprep.mubr.f32.mxu0 %v753
      %1087 = vmatmul.mubr.f32.gmra.mxu0 %v797
      %v1088 = vpop.f32.mrf.mxu0
      %v1089 = vadd.f32 0.0, %v1088
      %v1090 = vpop.f32.mrf.mxu0
      %1091 = vmatprep.mubr.f32.mxu0 %v754
      %1092 = vmatmul.mubr.f32.gmra.mxu0 %v842
      %v1093 = vpop.f32.mrf.mxu0
      %v1094 = vadd.f32 0.0, %v1093
      %v1095 = vpop.f32.mrf.mxu0
      %1096 = vmatprep.mubr.f32.mxu0 %v755
      %1097 = vmatmul.mubr.f32.gmra.mxu0 %v800
      %v1098 = vpop.f32.mrf.mxu0
      %v1099 = vadd.f32 0.0, %v1098
      %v1100 = vpop.f32.mrf.mxu0
      %1101 = vmatprep.mubr.f32.mxu0 %v756
      %1102 = vmatmul.mubr.f32.gmra.mxu0 %v843
      %v1103 = vpop.f32.mrf.mxu0
      %v1104 = vadd.f32 0.0, %v1103
      %v1105 = vpop.f32.mrf.mxu0
      %1106 = vmatprep.mubr.f32.mxu0 %v757
      %1107 = vmatmul.mubr.f32.gmra.mxu0 %v803
      %v1108 = vpop.f32.mrf.mxu0
      %v1109 = vadd.f32 0.0, %v1108
      %v1110 = vpop.f32.mrf.mxu0
      %1111 = vmatprep.mubr.f32.mxu0 %v758
      %1112 = vmatmul.mubr.f32.gmra.mxu0 %v844
      %v1113 = vpop.f32.mrf.mxu0
      %v1114 = vadd.f32 0.0, %v1113
      %v1115 = vpop.f32.mrf.mxu0
      %1116 = vmatprep.mubr.f32.mxu0 %v759
      %1117 = vmatmul.mubr.f32.gmra.mxu0 %v806
      %v1118 = vpop.f32.mrf.mxu0
      %v1119 = vadd.f32 0.0, %v1118
      %v1120 = vpop.f32.mrf.mxu0
      %1121 = vmatprep.mubr.f32.mxu0 %v760
      %1122 = vmatmul.mubr.f32.gmra.mxu0 %v845
      %v1123 = vpop.f32.mrf.mxu0
      %v1124 = vadd.f32 0.0, %v1123
      %v1125 = vpop.f32.mrf.mxu0
      %1126 = vmatprep.mubr.f32.mxu0 %v761
      %1127 = vmatmul.mubr.f32.gmra.mxu0 %v809
      %v1128 = vpop.f32.mrf.mxu0
      %v1129 = vadd.f32 0.0, %v1128
      %v1130 = vpop.f32.mrf.mxu0
      %1131 = vmatprep.mubr.f32.mxu0 %v762
      %1132 = vmatmul.mubr.f32.gmra.mxu0 %v846
      %v1133 = vpop.f32.mrf.mxu0
      %v1134 = vadd.f32 0.0, %v1133
      %v1135 = vpop.f32.mrf.mxu0
      %1136 = vmatprep.mubr.f32.mxu0 %v763
      %1137 = vmatmul.mubr.f32.gmra.mxu0 %v812
      %v1138 = vpop.f32.mrf.mxu0
      %v1139 = vadd.f32 0.0, %v1138
      %v1140 = vpop.f32.mrf.mxu0
      %1141 = vmatprep.mubr.f32.mxu0 %v764
      %1142 = vmatmul.mubr.f32.gmra.mxu0 %v847
      %v1143 = vpop.f32.mrf.mxu0
      %v1144 = vadd.f32 0.0, %v1143
      %v1145 = vpop.f32.mrf.mxu0
      %1146 = vmatprep.mubr.f32.mxu0 %v765
      %1147 = vmatmul.mubr.f32.gmra.mxu0 %v815
      %v1148 = vpop.f32.mrf.mxu0
      %v1149 = vadd.f32 0.0, %v1148
      %v1150 = vpop.f32.mrf.mxu0
      %1151 = vdwg.mxu0
      %1152 = vmatprep.subr.mxu0 0.0
      %1153 = vmatpush1.msra.mxu0 %v1006
      %1154 = vmatprep.subr.mxu0 0.0
      %1155 = vmatpush1.msra.mxu0 %v1005
      %1156 = vmatprep.subr.mxu0 0.0
      %1157 = vmatpush1.msra.mxu0 %v1004
      %1158 = vmatprep.subr.mxu0 0.0
      %1159 = vmatpush1.msra.mxu0 %v1003
      %1160 = vmatprep.subr.mxu0 0.0
      %1161 = vmatpush1.msra.mxu0 %v1002
      %1162 = vmatprep.subr.mxu0 0.0
      %1163 = vmatpush1.msra.mxu0 %v1001
      %1164 = vmatprep.subr.mxu0 0.0
      %1165 = vmatpush1.msra.mxu0 %v1000
      %1166 = vmatprep.subr.mxu0 0.0
      %1167 = vmatpush1.msra.mxu0 %v999
      %1168 = vmatprep.subr.mxu0 0.0
      %1169 = vmatpush1.msra.mxu0 %v998
      %1170 = vmatprep.subr.mxu0 0.0
      %1171 = vmatpush1.msra.mxu0 %v997
      %1172 = vmatprep.subr.mxu0 0.0
      %1173 = vmatpush1.msra.mxu0 %v996
      %1174 = vmatprep.subr.mxu0 0.0
      %1175 = vmatpush1.msra.mxu0 %v995
      %1176 = vmatprep.subr.mxu0 0.0
      %1177 = vmatpush1.msra.mxu0 %v994
      %1178 = vmatprep.subr.mxu0 0.0
      %1179 = vmatpush1.msra.mxu0 %v993
      %1180 = vmatprep.subr.mxu0 0.0
      %1181 = vmatpush1.msra.mxu0 %v992
      %1182 = vmatprep.subr.mxu0 0.0
      %1183 = vmatpush1.msra.mxu0 %v991
      %1184 = vmatprep.subr.mxu0 0.0
      %1185 = vmatpush2.msra.mxu0 0.0
      %1186 = vmatprep.subr.mxu0 0.0
      %1187 = vmatpush2.msra.mxu0 0.0
      %1188 = vmatprep.subr.mxu0 0.0
      %1189 = vmatpush2.msra.mxu0 0.0
      %1190 = vmatprep.subr.mxu0 0.0
      %1191 = vmatpush2.msra.mxu0 0.0
      %1192 = vmatprep.subr.mxu0 0.0
      %1193 = vmatpush2.msra.mxu0 0.0
      %1194 = vmatprep.subr.mxu0 0.0
      %1195 = vmatpush2.msra.mxu0 0.0
      %1196 = vmatprep.subr.mxu0 0.0
      %1197 = vmatpush2.msra.mxu0 0.0
      %1198 = vmatprep.subr.mxu0 0.0
      %1199 = vmatpush2.msra.mxu0 0.0
      %1200 = vmatprep.subr.mxu0 0.0
      %1201 = vmatpush2.msra.mxu0 0.0
      %1202 = vmatprep.subr.mxu0 0.0
      %1203 = vmatpush2.msra.mxu0 0.0
      %1204 = vmatprep.subr.mxu0 0.0
      %1205 = vmatpush2.msra.mxu0 0.0
      %1206 = vmatprep.subr.mxu0 0.0
      %1207 = vmatpush2.msra.mxu0 0.0
      %1208 = vmatprep.subr.mxu0 0.0
      %1209 = vmatpush2.msra.mxu0 0.0
      %1210 = vmatprep.subr.mxu0 0.0
      %1211 = vmatpush2.msra.mxu0 0.0
      %1212 = vmatprep.subr.mxu0 0.0
      %1213 = vmatpush2.msra.mxu0 0.0
      %1214 = vmatprep.subr.mxu0 0.0
      %1215 = vmatpush2.msra.mxu0 0.0
      %1216 = vmatprep.mubr.f32.mxu0 0.0
      %1217 = vmatmul.mubr.f32.gmra.mxu0 %v855
      %v1218 = vpop.f32.mrf.mxu0
      %v1219 = vadd.f32 %v1074, %v1218
      %v1220 = vpop.f32.mrf.mxu0
      %1221 = vmatprep.mubr.f32.mxu0 0.0
      %1222 = vmatmul.mubr.f32.gmra.mxu0 %v901
      %v1223 = vpop.f32.mrf.mxu0
      %v1224 = vadd.f32 %v1079, %v1223
      %v1225 = vpop.f32.mrf.mxu0
      %1226 = vmatprep.mubr.f32.mxu0 0.0
      %1227 = vmatmul.mubr.f32.gmra.mxu0 %v858
      %v1228 = vpop.f32.mrf.mxu0
      %v1229 = vadd.f32 %v1084, %v1228
      %v1230 = vpop.f32.mrf.mxu0
      %1231 = vmatprep.mubr.f32.mxu0 0.0
      %1232 = vmatmul.mubr.f32.gmra.mxu0 %v902
      %v1233 = vpop.f32.mrf.mxu0
      %v1234 = vadd.f32 %v1089, %v1233
      %v1235 = vpop.f32.mrf.mxu0
      %1236 = vmatprep.mubr.f32.mxu0 0.0
      %1237 = vmatmul.mubr.f32.gmra.mxu0 %v861
      %v1238 = vpop.f32.mrf.mxu0
      %v1239 = vadd.f32 %v1094, %v1238
      %v1240 = vpop.f32.mrf.mxu0
      %1241 = vmatprep.mubr.f32.mxu0 0.0
      %1242 = vmatmul.mubr.f32.gmra.mxu0 %v903
      %v1243 = vpop.f32.mrf.mxu0
      %v1244 = vadd.f32 %v1099, %v1243
      %v1245 = vpop.f32.mrf.mxu0
      %1246 = vmatprep.mubr.f32.mxu0 0.0
      %1247 = vmatmul.mubr.f32.gmra.mxu0 %v864
      %v1248 = vpop.f32.mrf.mxu0
      %v1249 = vadd.f32 %v1104, %v1248
      %v1250 = vpop.f32.mrf.mxu0
      %1251 = vmatprep.mubr.f32.mxu0 0.0
      %1252 = vmatmul.mubr.f32.gmra.mxu0 %v904
      %v1253 = vpop.f32.mrf.mxu0
      %v1254 = vadd.f32 %v1109, %v1253
      %v1255 = vpop.f32.mrf.mxu0
      %1256 = vmatprep.mubr.f32.mxu0 0.0
      %1257 = vmatmul.mubr.f32.gmra.mxu0 %v867
      %v1258 = vpop.f32.mrf.mxu0
      %v1259 = vadd.f32 %v1114, %v1258
      %v1260 = vpop.f32.mrf.mxu0
      %1261 = vmatprep.mubr.f32.mxu0 0.0
      %1262 = vmatmul.mubr.f32.gmra.mxu0 %v905
      %v1263 = vpop.f32.mrf.mxu0
      %v1264 = vadd.f32 %v1119, %v1263
      %v1265 = vpop.f32.mrf.mxu0
      %1266 = vmatprep.mubr.f32.mxu0 0.0
      %1267 = vmatmul.mubr.f32.gmra.mxu0 %v870
      %v1268 = vpop.f32.mrf.mxu0
      %v1269 = vadd.f32 %v1124, %v1268
      %v1270 = vpop.f32.mrf.mxu0
      %1271 = vmatprep.mubr.f32.mxu0 0.0
      %1272 = vmatmul.mubr.f32.gmra.mxu0 %v906
      %v1273 = vpop.f32.mrf.mxu0
      %v1274 = vadd.f32 %v1129, %v1273
      %v1275 = vpop.f32.mrf.mxu0
      %1276 = vmatprep.mubr.f32.mxu0 0.0
      %1277 = vmatmul.mubr.f32.gmra.mxu0 %v873
      %v1278 = vpop.f32.mrf.mxu0
      %v1279 = vadd.f32 %v1134, %v1278
      %v1280 = vpop.f32.mrf.mxu0
      %1281 = vmatprep.mubr.f32.mxu0 0.0
      %1282 = vmatmul.mubr.f32.gmra.mxu0 %v907
      %v1283 = vpop.f32.mrf.mxu0
      %v1284 = vadd.f32 %v1139, %v1283
      %v1285 = vpop.f32.mrf.mxu0
      %1286 = vmatprep.mubr.f32.mxu0 0.0
      %1287 = vmatmul.mubr.f32.gmra.mxu0 %v876
      %v1288 = vpop.f32.mrf.mxu0
      %v1289 = vadd.f32 %v1144, %v1288
      %v1290 = vpop.f32.mrf.mxu0
      %1291 = vmatprep.mubr.f32.mxu0 0.0
      %1292 = vmatmul.mubr.f32.gmra.mxu0 %v908
      %v1293 = vpop.f32.mrf.mxu0
      %v1294 = vadd.f32 %v1149, %v1293
      %v1295 = vpop.f32.mrf.mxu0
      %1296 = vdwg.mxu0
      %1297 = vmatprep.subr.mxu0 0.0
      %1298 = vmatpush1.msra.mxu0 %v925
      %1299 = vmatprep.subr.mxu0 0.0
      %1300 = vmatpush1.msra.mxu0 %v924
      %1301 = vmatprep.subr.mxu0 0.0
      %1302 = vmatpush1.msra.mxu0 %v923
      %1303 = vmatprep.subr.mxu0 0.0
      %1304 = vmatpush1.msra.mxu0 %v922
      %1305 = vmatprep.subr.mxu0 0.0
      %1306 = vmatpush1.msra.mxu0 %v921
      %1307 = vmatprep.subr.mxu0 0.0
      %1308 = vmatpush1.msra.mxu0 %v920
      %1309 = vmatprep.subr.mxu0 0.0
      %1310 = vmatpush1.msra.mxu0 %v919
      %1311 = vmatprep.subr.mxu0 0.0
      %1312 = vmatpush1.msra.mxu0 %v918
      %1313 = vmatprep.subr.mxu0 0.0
      %1314 = vmatpush1.msra.mxu0 %v917
      %1315 = vmatprep.subr.mxu0 0.0
      %1316 = vmatpush1.msra.mxu0 %v916
      %1317 = vmatprep.subr.mxu0 0.0
      %1318 = vmatpush1.msra.mxu0 %v915
      %1319 = vmatprep.subr.mxu0 0.0
      %1320 = vmatpush1.msra.mxu0 %v914
      %1321 = vmatprep.subr.mxu0 0.0
      %1322 = vmatpush1.msra.mxu0 %v913
      %1323 = vmatprep.subr.mxu0 0.0
      %1324 = vmatpush1.msra.mxu0 %v912
      %1325 = vmatprep.subr.mxu0 0.0
      %1326 = vmatpush1.msra.mxu0 %v911
      %1327 = vmatprep.subr.mxu0 0.0
      %1328 = vmatpush1.msra.mxu0 %v910
      %1329 = vmatprep.subr.mxu0 0.0
      %1330 = vmatpush2.msra.mxu0 %v941
      %1331 = vmatprep.subr.mxu0 0.0
      %1332 = vmatpush2.msra.mxu0 %v940
      %1333 = vmatprep.subr.mxu0 0.0
      %1334 = vmatpush2.msra.mxu0 %v939
      %1335 = vmatprep.subr.mxu0 0.0
      %1336 = vmatpush2.msra.mxu0 %v938
      %1337 = vmatprep.subr.mxu0 0.0
      %1338 = vmatpush2.msra.mxu0 %v937
      %1339 = vmatprep.subr.mxu0 0.0
      %1340 = vmatpush2.msra.mxu0 %v936
      %1341 = vmatprep.subr.mxu0 0.0
      %1342 = vmatpush2.msra.mxu0 %v935
      %1343 = vmatprep.subr.mxu0 0.0
      %1344 = vmatpush2.msra.mxu0 %v934
      %1345 = vmatprep.subr.mxu0 0.0
      %1346 = vmatpush2.msra.mxu0 %v933
      %1347 = vmatprep.subr.mxu0 0.0
      %1348 = vmatpush2.msra.mxu0 %v932
      %1349 = vmatprep.subr.mxu0 0.0
      %1350 = vmatpush2.msra.mxu0 %v931
      %1351 = vmatprep.subr.mxu0 0.0
      %1352 = vmatpush2.msra.mxu0 %v930
      %1353 = vmatprep.subr.mxu0 0.0
      %1354 = vmatpush2.msra.mxu0 %v929
      %1355 = vmatprep.subr.mxu0 0.0
      %1356 = vmatpush2.msra.mxu0 %v928
      %1357 = vmatprep.subr.mxu0 0.0
      %1358 = vmatpush2.msra.mxu0 %v927
      %1359 = vmatprep.subr.mxu0 0.0
      %1360 = vmatpush2.msra.mxu0 %v926
      %1361 = vmatprep.mubr.f32.mxu0 %v748
      %1362 = vmatmul.mubr.f32.gmra.mxu0 %v839
      %v1363 = vpop.f32.mrf.mxu0
      %v1364 = vadd.f32 %v1219, %v1363
      %v1365 = vpop.f32.mrf.mxu0
      %1366 = vmatprep.mubr.f32.mxu0 %v749
      %1367 = vmatmul.mubr.f32.gmra.mxu0 %v791
      %v1368 = vpop.f32.mrf.mxu0
      %v1369 = vadd.f32 %v1224, %v1368
      %v1370 = vpop.f32.mrf.mxu0
      %1371 = vmatprep.mubr.f32.mxu0 %v750
      %1372 = vmatmul.mubr.f32.gmra.mxu0 %v840
      %v1373 = vpop.f32.mrf.mxu0
      %v1374 = vadd.f32 %v1229, %v1373
      %v1375 = vpop.f32.mrf.mxu0
      %1376 = vmatprep.mubr.f32.mxu0 %v751
      %1377 = vmatmul.mubr.f32.gmra.mxu0 %v794
      %v1378 = vpop.f32.mrf.mxu0
      %v1379 = vadd.f32 %v1234, %v1378
      %v1380 = vpop.f32.mrf.mxu0
      %1381 = vmatprep.mubr.f32.mxu0 %v752
      %1382 = vmatmul.mubr.f32.gmra.mxu0 %v841
      %v1383 = vpop.f32.mrf.mxu0
      %v1384 = vadd.f32 %v1239, %v1383
      %v1385 = vpop.f32.mrf.mxu0
      %1386 = vmatprep.mubr.f32.mxu0 %v753
      %1387 = vmatmul.mubr.f32.gmra.mxu0 %v797
      %v1388 = vpop.f32.mrf.mxu0
      %v1389 = vadd.f32 %v1244, %v1388
      %v1390 = vpop.f32.mrf.mxu0
      %1391 = vmatprep.mubr.f32.mxu0 %v754
      %1392 = vmatmul.mubr.f32.gmra.mxu0 %v842
      %v1393 = vpop.f32.mrf.mxu0
      %v1394 = vadd.f32 %v1249, %v1393
      %v1395 = vpop.f32.mrf.mxu0
      %1396 = vmatprep.mubr.f32.mxu0 %v755
      %1397 = vmatmul.mubr.f32.gmra.mxu0 %v800
      %v1398 = vpop.f32.mrf.mxu0
      %v1399 = vadd.f32 %v1254, %v1398
      %v1400 = vpop.f32.mrf.mxu0
      %1401 = vmatprep.mubr.f32.mxu0 %v756
      %1402 = vmatmul.mubr.f32.gmra.mxu0 %v843
      %v1403 = vpop.f32.mrf.mxu0
      %v1404 = vadd.f32 %v1259, %v1403
      %v1405 = vpop.f32.mrf.mxu0
      %1406 = vmatprep.mubr.f32.mxu0 %v757
      %1407 = vmatmul.mubr.f32.gmra.mxu0 %v803
      %v1408 = vpop.f32.mrf.mxu0
      %v1409 = vadd.f32 %v1264, %v1408
      %v1410 = vpop.f32.mrf.mxu0
      %1411 = vmatprep.mubr.f32.mxu0 %v758
      %1412 = vmatmul.mubr.f32.gmra.mxu0 %v844
      %v1413 = vpop.f32.mrf.mxu0
      %v1414 = vadd.f32 %v1269, %v1413
      %v1415 = vpop.f32.mrf.mxu0
      %1416 = vmatprep.mubr.f32.mxu0 %v759
      %1417 = vmatmul.mubr.f32.gmra.mxu0 %v806
      %v1418 = vpop.f32.mrf.mxu0
      %v1419 = vadd.f32 %v1274, %v1418
      %v1420 = vpop.f32.mrf.mxu0
      %1421 = vmatprep.mubr.f32.mxu0 %v760
      %1422 = vmatmul.mubr.f32.gmra.mxu0 %v845
      %v1423 = vpop.f32.mrf.mxu0
      %v1424 = vadd.f32 %v1279, %v1423
      %v1425 = vpop.f32.mrf.mxu0
      %1426 = vmatprep.mubr.f32.mxu0 %v761
      %1427 = vmatmul.mubr.f32.gmra.mxu0 %v809
      %v1428 = vpop.f32.mrf.mxu0
      %v1429 = vadd.f32 %v1284, %v1428
      %v1430 = vpop.f32.mrf.mxu0
      %1431 = vmatprep.mubr.f32.mxu0 %v762
      %1432 = vmatmul.mubr.f32.gmra.mxu0 %v846
      %v1433 = vpop.f32.mrf.mxu0
      %v1434 = vadd.f32 %v1289, %v1433
      %v1435 = vpop.f32.mrf.mxu0
      %1436 = vmatprep.mubr.f32.mxu0 %v763
      %1437 = vmatmul.mubr.f32.gmra.mxu0 %v812
      %v1438 = vpop.f32.mrf.mxu0
      %v1439 = vadd.f32 %v1294, %v1438
      %v1440 = vpop.f32.mrf.mxu0
      %1441 = vdwg.mxu0
      %1442 = vmatprep.subr.mxu0 0.0
      %1443 = vmatpush1.msra.mxu0 %v957
      %1444 = vmatprep.subr.mxu0 0.0
      %1445 = vmatpush1.msra.mxu0 %v956
      %1446 = vmatprep.subr.mxu0 0.0
      %1447 = vmatpush1.msra.mxu0 %v955
      %1448 = vmatprep.subr.mxu0 0.0
      %1449 = vmatpush1.msra.mxu0 %v954
      %1450 = vmatprep.subr.mxu0 0.0
      %1451 = vmatpush1.msra.mxu0 %v953
      %1452 = vmatprep.subr.mxu0 0.0
      %1453 = vmatpush1.msra.mxu0 %v952
      %1454 = vmatprep.subr.mxu0 0.0
      %1455 = vmatpush1.msra.mxu0 %v951
      %1456 = vmatprep.subr.mxu0 0.0
      %1457 = vmatpush1.msra.mxu0 %v950
      %1458 = vmatprep.subr.mxu0 0.0
      %1459 = vmatpush1.msra.mxu0 %v949
      %1460 = vmatprep.subr.mxu0 0.0
      %1461 = vmatpush1.msra.mxu0 %v948
      %1462 = vmatprep.subr.mxu0 0.0
      %1463 = vmatpush1.msra.mxu0 %v947
      %1464 = vmatprep.subr.mxu0 0.0
      %1465 = vmatpush1.msra.mxu0 %v946
      %1466 = vmatprep.subr.mxu0 0.0
      %1467 = vmatpush1.msra.mxu0 %v945
      %1468 = vmatprep.subr.mxu0 0.0
      %1469 = vmatpush1.msra.mxu0 %v944
      %1470 = vmatprep.subr.mxu0 0.0
      %1471 = vmatpush1.msra.mxu0 %v943
      %1472 = vmatprep.subr.mxu0 0.0
      %1473 = vmatpush1.msra.mxu0 %v942
      %1474 = vmatprep.subr.mxu0 0.0
      %1475 = vmatpush2.msra.mxu0 0.0
      %1476 = vmatprep.subr.mxu0 0.0
      %1477 = vmatpush2.msra.mxu0 0.0
      %1478 = vmatprep.subr.mxu0 0.0
      %1479 = vmatpush2.msra.mxu0 0.0
      %1480 = vmatprep.subr.mxu0 0.0
      %1481 = vmatpush2.msra.mxu0 0.0
      %1482 = vmatprep.subr.mxu0 0.0
      %1483 = vmatpush2.msra.mxu0 0.0
      %1484 = vmatprep.subr.mxu0 0.0
      %1485 = vmatpush2.msra.mxu0 0.0
      %1486 = vmatprep.subr.mxu0 0.0
      %1487 = vmatpush2.msra.mxu0 0.0
      %1488 = vmatprep.subr.mxu0 0.0
      %1489 = vmatpush2.msra.mxu0 0.0
      %1490 = vmatprep.subr.mxu0 0.0
      %1491 = vmatpush2.msra.mxu0 0.0
      %1492 = vmatprep.subr.mxu0 0.0
      %1493 = vmatpush2.msra.mxu0 0.0
      %1494 = vmatprep.subr.mxu0 0.0
      %1495 = vmatpush2.msra.mxu0 0.0
      %1496 = vmatprep.subr.mxu0 0.0
      %1497 = vmatpush2.msra.mxu0 0.0
      %1498 = vmatprep.subr.mxu0 0.0
      %1499 = vmatpush2.msra.mxu0 0.0
      %1500 = vmatprep.subr.mxu0 0.0
      %1501 = vmatpush2.msra.mxu0 0.0
      %1502 = vmatprep.subr.mxu0 0.0
      %1503 = vmatpush2.msra.mxu0 0.0
      %1504 = vmatprep.subr.mxu0 0.0
      %1505 = vmatpush2.msra.mxu0 0.0
      %1506 = vmatprep.mubr.f32.mxu0 0.0
      %1507 = vmatmul.mubr.f32.gmra.mxu0 %v852
      %v1508 = vpop.f32.mrf.mxu0
      %v1509 = vadd.f32 %v1364, %v1508
      %v1510 = vpop.f32.mrf.mxu0
      %1511 = vmatprep.mubr.f32.mxu0 0.0
      %1512 = vmatmul.mubr.f32.gmra.mxu0 %v900
      %v1513 = vpop.f32.mrf.mxu0
      %v1514 = vadd.f32 %v1369, %v1513
      %v1515 = vpop.f32.mrf.mxu0
      %1516 = vmatprep.mubr.f32.mxu0 0.0
      %1517 = vmatmul.mubr.f32.gmra.mxu0 %v855
      %v1518 = vpop.f32.mrf.mxu0
      %v1519 = vadd.f32 %v1374, %v1518
      %v1520 = vpop.f32.mrf.mxu0
      %1521 = vmatprep.mubr.f32.mxu0 0.0
      %1522 = vmatmul.mubr.f32.gmra.mxu0 %v901
      %v1523 = vpop.f32.mrf.mxu0
      %v1524 = vadd.f32 %v1379, %v1523
      %v1525 = vpop.f32.mrf.mxu0
      %1526 = vmatprep.mubr.f32.mxu0 0.0
      %1527 = vmatmul.mubr.f32.gmra.mxu0 %v858
      %v1528 = vpop.f32.mrf.mxu0
      %v1529 = vadd.f32 %v1384, %v1528
      %v1530 = vpop.f32.mrf.mxu0
      %1531 = vmatprep.mubr.f32.mxu0 0.0
      %1532 = vmatmul.mubr.f32.gmra.mxu0 %v902
      %v1533 = vpop.f32.mrf.mxu0
      %v1534 = vadd.f32 %v1389, %v1533
      %v1535 = vpop.f32.mrf.mxu0
      %1536 = vmatprep.mubr.f32.mxu0 0.0
      %1537 = vmatmul.mubr.f32.gmra.mxu0 %v861
      %v1538 = vpop.f32.mrf.mxu0
      %v1539 = vadd.f32 %v1394, %v1538
      %v1540 = vpop.f32.mrf.mxu0
      %1541 = vmatprep.mubr.f32.mxu0 0.0
      %1542 = vmatmul.mubr.f32.gmra.mxu0 %v903
      %v1543 = vpop.f32.mrf.mxu0
      %v1544 = vadd.f32 %v1399, %v1543
      %v1545 = vpop.f32.mrf.mxu0
      %1546 = vmatprep.mubr.f32.mxu0 0.0
      %1547 = vmatmul.mubr.f32.gmra.mxu0 %v864
      %v1548 = vpop.f32.mrf.mxu0
      %v1549 = vadd.f32 %v1404, %v1548
      %v1550 = vpop.f32.mrf.mxu0
      %1551 = vmatprep.mubr.f32.mxu0 0.0
      %1552 = vmatmul.mubr.f32.gmra.mxu0 %v904
      %v1553 = vpop.f32.mrf.mxu0
      %v1554 = vadd.f32 %v1409, %v1553
      %v1555 = vpop.f32.mrf.mxu0
      %1556 = vmatprep.mubr.f32.mxu0 0.0
      %1557 = vmatmul.mubr.f32.gmra.mxu0 %v867
      %v1558 = vpop.f32.mrf.mxu0
      %v1559 = vadd.f32 %v1414, %v1558
      %v1560 = vpop.f32.mrf.mxu0
      %1561 = vmatprep.mubr.f32.mxu0 0.0
      %1562 = vmatmul.mubr.f32.gmra.mxu0 %v905
      %v1563 = vpop.f32.mrf.mxu0
      %v1564 = vadd.f32 %v1419, %v1563
      %v1565 = vpop.f32.mrf.mxu0
      %1566 = vmatprep.mubr.f32.mxu0 0.0
      %1567 = vmatmul.mubr.f32.gmra.mxu0 %v870
      %v1568 = vpop.f32.mrf.mxu0
      %v1569 = vadd.f32 %v1424, %v1568
      %v1570 = vpop.f32.mrf.mxu0
      %1571 = vmatprep.mubr.f32.mxu0 0.0
      %1572 = vmatmul.mubr.f32.gmra.mxu0 %v906
      %v1573 = vpop.f32.mrf.mxu0
      %v1574 = vadd.f32 %v1429, %v1573
      %v1575 = vpop.f32.mrf.mxu0
      %1576 = vmatprep.mubr.f32.mxu0 0.0
      %1577 = vmatmul.mubr.f32.gmra.mxu0 %v873
      %v1578 = vpop.f32.mrf.mxu0
      %v1579 = vadd.f32 %v1434, %v1578
      %v1580 = vpop.f32.mrf.mxu0
      %1581 = vmatprep.mubr.f32.mxu0 0.0
      %1582 = vmatmul.mubr.f32.gmra.mxu0 %v907
      %v1583 = vpop.f32.mrf.mxu0
      %v1584 = vadd.f32 %v1439, %v1583
      %v1585 = vpop.f32.mrf.mxu0
      %1586 = vdwg.mxu0
      %s1587 = scalar_lea.vmem %s5, 768
      %v1588 = vld [vmem:[%s1587] sm:$0xff]
      %v1589 = vld [vmem:[%s1587 + $0x8] sm:$0xff]
      %v1590 = vld [vmem:[%s1587 + $0x10] sm:$0xff]
      %v1591 = vld [vmem:[%s1587 + $0x18] sm:$0xff]
      %v1592 = vld [vmem:[%s1587 + $0x20] sm:$0xff]
      %v1593 = vld [vmem:[%s1587 + $0x28] sm:$0xff]
      %v1594 = vld [vmem:[%s1587 + $0x30] sm:$0xff]
      %v1595 = vld [vmem:[%s1587 + $0x38] sm:$0xff]
      %v1596 = vld [vmem:[%s1587 + $0x40] sm:$0xff]
      %v1597 = vld [vmem:[%s1587 + $0x48] sm:$0xff]
      %v1598 = vld [vmem:[%s1587 + $0x50] sm:$0xff]
      %v1599 = vld [vmem:[%s1587 + $0x58] sm:$0xff]
      %v1600 = vld [vmem:[%s1587 + $0x60] sm:$0xff]
      %v1601 = vld [vmem:[%s1587 + $0x68] sm:$0xff]
      %v1602 = vld [vmem:[%s1587 + $0x70] sm:$0xff]
      %v1603 = vld [vmem:[%s1587 + $0x78] sm:$0xff]
      %v1604 = vld [vmem:[%s1587 + $0x80] sm:$0xff]
      %v1605 = vld [vmem:[%s1587 + $0x88] sm:$0xff]
      %v1606 = vld [vmem:[%s1587 + $0x90] sm:$0xff]
      %v1607 = vld [vmem:[%s1587 + $0x98] sm:$0xff]
      %v1608 = vld [vmem:[%s1587 + $0xa0] sm:$0xff]
      %v1609 = vld [vmem:[%s1587 + $0xa8] sm:$0xff]
      %v1610 = vld [vmem:[%s1587 + $0xb0] sm:$0xff]
      %v1611 = vld [vmem:[%s1587 + $0xb8] sm:$0xff]
      %v1612 = vld [vmem:[%s1587 + $0xc0] sm:$0xff]
      %v1613 = vld [vmem:[%s1587 + $0xc8] sm:$0xff]
      %v1614 = vld [vmem:[%s1587 + $0xd0] sm:$0xff]
      %v1615 = vld [vmem:[%s1587 + $0xd8] sm:$0xff]
      %v1616 = vld [vmem:[%s1587 + $0xe0] sm:$0xff]
      %v1617 = vld [vmem:[%s1587 + $0xe8] sm:$0xff]
      %v1618 = vld [vmem:[%s1587 + $0xf0] sm:$0xff]
      %v1619 = vld [vmem:[%s1587 + $0xf8] sm:$0xff]
      %v1620 = vld [vmem:[%s1587 + $0x100] sm:$0xff]
      %v1621 = vld [vmem:[%s1587 + $0x108] sm:$0xff]
      %v1622 = vld [vmem:[%s1587 + $0x110] sm:$0xff]
      %v1623 = vld [vmem:[%s1587 + $0x118] sm:$0xff]
      %v1624 = vld [vmem:[%s1587 + $0x120] sm:$0xff]
      %v1625 = vld [vmem:[%s1587 + $0x128] sm:$0xff]
      %v1626 = vld [vmem:[%s1587 + $0x130] sm:$0xff]
      %v1627 = vld [vmem:[%s1587 + $0x138] sm:$0xff]
      %v1628 = vld [vmem:[%s1587 + $0x140] sm:$0xff]
      %v1629 = vld [vmem:[%s1587 + $0x148] sm:$0xff]
      %v1630 = vld [vmem:[%s1587 + $0x150] sm:$0xff]
      %v1631 = vld [vmem:[%s1587 + $0x158] sm:$0xff]
      %v1632 = vld [vmem:[%s1587 + $0x160] sm:$0xff]
      %v1633 = vld [vmem:[%s1587 + $0x168] sm:$0xff]
      %v1634 = vld [vmem:[%s1587 + $0x170] sm:$0xff]
      %v1635 = vld [vmem:[%s1587 + $0x178] sm:$0xff]
      %1636 = vmatprep.subr.mxu0 0.0
      %1637 = vmatpush1.msra.mxu0 %v1603
      %1638 = vmatprep.subr.mxu0 0.0
      %1639 = vmatpush1.msra.mxu0 %v1602
      %1640 = vmatprep.subr.mxu0 0.0
      %1641 = vmatpush1.msra.mxu0 %v1601
      %1642 = vmatprep.subr.mxu0 0.0
      %1643 = vmatpush1.msra.mxu0 %v1600
      %1644 = vmatprep.subr.mxu0 0.0
      %1645 = vmatpush1.msra.mxu0 %v1599
      %1646 = vmatprep.subr.mxu0 0.0
      %1647 = vmatpush1.msra.mxu0 %v1598
      %1648 = vmatprep.subr.mxu0 0.0
      %1649 = vmatpush1.msra.mxu0 %v1597
      %1650 = vmatprep.subr.mxu0 0.0
      %1651 = vmatpush1.msra.mxu0 %v1596
      %1652 = vmatprep.subr.mxu0 0.0
      %1653 = vmatpush1.msra.mxu0 %v1595
      %1654 = vmatprep.subr.mxu0 0.0
      %1655 = vmatpush1.msra.mxu0 %v1594
      %1656 = vmatprep.subr.mxu0 0.0
      %1657 = vmatpush1.msra.mxu0 %v1593
      %1658 = vmatprep.subr.mxu0 0.0
      %1659 = vmatpush1.msra.mxu0 %v1592
      %1660 = vmatprep.subr.mxu0 0.0
      %1661 = vmatpush1.msra.mxu0 %v1591
      %1662 = vmatprep.subr.mxu0 0.0
      %1663 = vmatpush1.msra.mxu0 %v1590
      %1664 = vmatprep.subr.mxu0 0.0
      %1665 = vmatpush1.msra.mxu0 %v1589
      %1666 = vmatprep.subr.mxu0 0.0
      %1667 = vmatpush1.msra.mxu0 %v1588
      %1668 = vmatprep.subr.mxu0 0.0
      %1669 = vmatpush2.msra.mxu0 %v1619
      %1670 = vmatprep.subr.mxu0 0.0
      %1671 = vmatpush2.msra.mxu0 %v1618
      %1672 = vmatprep.subr.mxu0 0.0
      %1673 = vmatpush2.msra.mxu0 %v1617
      %1674 = vmatprep.subr.mxu0 0.0
      %1675 = vmatpush2.msra.mxu0 %v1616
      %1676 = vmatprep.subr.mxu0 0.0
      %1677 = vmatpush2.msra.mxu0 %v1615
      %1678 = vmatprep.subr.mxu0 0.0
      %1679 = vmatpush2.msra.mxu0 %v1614
      %1680 = vmatprep.subr.mxu0 0.0
      %1681 = vmatpush2.msra.mxu0 %v1613
      %1682 = vmatprep.subr.mxu0 0.0
      %1683 = vmatpush2.msra.mxu0 %v1612
      %1684 = vmatprep.subr.mxu0 0.0
      %1685 = vmatpush2.msra.mxu0 %v1611
      %1686 = vmatprep.subr.mxu0 0.0
      %1687 = vmatpush2.msra.mxu0 %v1610
      %1688 = vmatprep.subr.mxu0 0.0
      %1689 = vmatpush2.msra.mxu0 %v1609
      %1690 = vmatprep.subr.mxu0 0.0
      %1691 = vmatpush2.msra.mxu0 %v1608
      %1692 = vmatprep.subr.mxu0 0.0
      %1693 = vmatpush2.msra.mxu0 %v1607
      %1694 = vmatprep.subr.mxu0 0.0
      %1695 = vmatpush2.msra.mxu0 %v1606
      %1696 = vmatprep.subr.mxu0 0.0
      %1697 = vmatpush2.msra.mxu0 %v1605
      %1698 = vmatprep.subr.mxu0 0.0
      %1699 = vmatpush2.msra.mxu0 %v1604
      %1700 = vmatprep.mubr.f32.mxu0 %v752
      %1701 = vmatmul.mubr.f32.gmra.mxu0 %v841
      %v1702 = vpop.f32.mrf.mxu0
      %v1703 = vadd.f32 0.0, %v1702
      %v1704 = vpop.f32.mrf.mxu0
      %1705 = vmatprep.mubr.f32.mxu0 %v753
      %1706 = vmatmul.mubr.f32.gmra.mxu0 %v797
      %v1707 = vpop.f32.mrf.mxu0
      %v1708 = vadd.f32 0.0, %v1707
      %v1709 = vpop.f32.mrf.mxu0
      %1710 = vmatprep.mubr.f32.mxu0 %v754
      %1711 = vmatmul.mubr.f32.gmra.mxu0 %v842
      %v1712 = vpop.f32.mrf.mxu0
      %v1713 = vadd.f32 0.0, %v1712
      %v1714 = vpop.f32.mrf.mxu0
      %1715 = vmatprep.mubr.f32.mxu0 %v755
      %1716 = vmatmul.mubr.f32.gmra.mxu0 %v800
      %v1717 = vpop.f32.mrf.mxu0
      %v1718 = vadd.f32 0.0, %v1717
      %v1719 = vpop.f32.mrf.mxu0
      %1720 = vmatprep.mubr.f32.mxu0 %v756
      %1721 = vmatmul.mubr.f32.gmra.mxu0 %v843
      %v1722 = vpop.f32.mrf.mxu0
      %v1723 = vadd.f32 0.0, %v1722
      %v1724 = vpop.f32.mrf.mxu0
      %1725 = vmatprep.mubr.f32.mxu0 %v757
      %1726 = vmatmul.mubr.f32.gmra.mxu0 %v803
      %v1727 = vpop.f32.mrf.mxu0
      %v1728 = vadd.f32 0.0, %v1727
      %v1729 = vpop.f32.mrf.mxu0
      %1730 = vmatprep.mubr.f32.mxu0 %v758
      %1731 = vmatmul.mubr.f32.gmra.mxu0 %v844
      %v1732 = vpop.f32.mrf.mxu0
      %v1733 = vadd.f32 0.0, %v1732
      %v1734 = vpop.f32.mrf.mxu0
      %1735 = vmatprep.mubr.f32.mxu0 %v759
      %1736 = vmatmul.mubr.f32.gmra.mxu0 %v806
      %v1737 = vpop.f32.mrf.mxu0
      %v1738 = vadd.f32 0.0, %v1737
      %v1739 = vpop.f32.mrf.mxu0
      %1740 = vmatprep.mubr.f32.mxu0 %v760
      %1741 = vmatmul.mubr.f32.gmra.mxu0 %v845
      %v1742 = vpop.f32.mrf.mxu0
      %v1743 = vadd.f32 0.0, %v1742
      %v1744 = vpop.f32.mrf.mxu0
      %1745 = vmatprep.mubr.f32.mxu0 %v761
      %1746 = vmatmul.mubr.f32.gmra.mxu0 %v809
      %v1747 = vpop.f32.mrf.mxu0
      %v1748 = vadd.f32 0.0, %v1747
      %v1749 = vpop.f32.mrf.mxu0
      %1750 = vmatprep.mubr.f32.mxu0 %v762
      %1751 = vmatmul.mubr.f32.gmra.mxu0 %v846
      %v1752 = vpop.f32.mrf.mxu0
      %v1753 = vadd.f32 0.0, %v1752
      %v1754 = vpop.f32.mrf.mxu0
      %1755 = vmatprep.mubr.f32.mxu0 %v763
      %1756 = vmatmul.mubr.f32.gmra.mxu0 %v812
      %v1757 = vpop.f32.mrf.mxu0
      %v1758 = vadd.f32 0.0, %v1757
      %v1759 = vpop.f32.mrf.mxu0
      %1760 = vmatprep.mubr.f32.mxu0 %v764
      %1761 = vmatmul.mubr.f32.gmra.mxu0 %v847
      %v1762 = vpop.f32.mrf.mxu0
      %v1763 = vadd.f32 0.0, %v1762
      %v1764 = vpop.f32.mrf.mxu0
      %1765 = vmatprep.mubr.f32.mxu0 %v765
      %1766 = vmatmul.mubr.f32.gmra.mxu0 %v815
      %v1767 = vpop.f32.mrf.mxu0
      %v1768 = vadd.f32 0.0, %v1767
      %v1769 = vpop.f32.mrf.mxu0
      %1770 = vmatprep.mubr.f32.mxu0 %v766
      %1771 = vmatmul.mubr.f32.gmra.mxu0 %v848
      %v1772 = vpop.f32.mrf.mxu0
      %v1773 = vadd.f32 0.0, %v1772
      %v1774 = vpop.f32.mrf.mxu0
      %1775 = vmatprep.mubr.f32.mxu0 %v767
      %1776 = vmatmul.mubr.f32.gmra.mxu0 %v818
      %v1777 = vpop.f32.mrf.mxu0
      %v1778 = vadd.f32 0.0, %v1777
      %v1779 = vpop.f32.mrf.mxu0
      %1780 = vdwg.mxu0
      %1781 = vmatprep.subr.mxu0 0.0
      %1782 = vmatpush1.msra.mxu0 %v1635
      %1783 = vmatprep.subr.mxu0 0.0
      %1784 = vmatpush1.msra.mxu0 %v1634
      %1785 = vmatprep.subr.mxu0 0.0
      %1786 = vmatpush1.msra.mxu0 %v1633
      %1787 = vmatprep.subr.mxu0 0.0
      %1788 = vmatpush1.msra.mxu0 %v1632
      %1789 = vmatprep.subr.mxu0 0.0
      %1790 = vmatpush1.msra.mxu0 %v1631
      %1791 = vmatprep.subr.mxu0 0.0
      %1792 = vmatpush1.msra.mxu0 %v1630
      %1793 = vmatprep.subr.mxu0 0.0
      %1794 = vmatpush1.msra.mxu0 %v1629
      %1795 = vmatprep.subr.mxu0 0.0
      %1796 = vmatpush1.msra.mxu0 %v1628
      %1797 = vmatprep.subr.mxu0 0.0
      %1798 = vmatpush1.msra.mxu0 %v1627
      %1799 = vmatprep.subr.mxu0 0.0
      %1800 = vmatpush1.msra.mxu0 %v1626
      %1801 = vmatprep.subr.mxu0 0.0
      %1802 = vmatpush1.msra.mxu0 %v1625
      %1803 = vmatprep.subr.mxu0 0.0
      %1804 = vmatpush1.msra.mxu0 %v1624
      %1805 = vmatprep.subr.mxu0 0.0
      %1806 = vmatpush1.msra.mxu0 %v1623
      %1807 = vmatprep.subr.mxu0 0.0
      %1808 = vmatpush1.msra.mxu0 %v1622
      %1809 = vmatprep.subr.mxu0 0.0
      %1810 = vmatpush1.msra.mxu0 %v1621
      %1811 = vmatprep.subr.mxu0 0.0
      %1812 = vmatpush1.msra.mxu0 %v1620
      %1813 = vmatprep.subr.mxu0 0.0
      %1814 = vmatpush2.msra.mxu0 0.0
      %1815 = vmatprep.subr.mxu0 0.0
      %1816 = vmatpush2.msra.mxu0 0.0
      %1817 = vmatprep.subr.mxu0 0.0
      %1818 = vmatpush2.msra.mxu0 0.0
      %1819 = vmatprep.subr.mxu0 0.0
      %1820 = vmatpush2.msra.mxu0 0.0
      %1821 = vmatprep.subr.mxu0 0.0
      %1822 = vmatpush2.msra.mxu0 0.0
      %1823 = vmatprep.subr.mxu0 0.0
      %1824 = vmatpush2.msra.mxu0 0.0
      %1825 = vmatprep.subr.mxu0 0.0
      %1826 = vmatpush2.msra.mxu0 0.0
      %1827 = vmatprep.subr.mxu0 0.0
      %1828 = vmatpush2.msra.mxu0 0.0
      %1829 = vmatprep.subr.mxu0 0.0
      %1830 = vmatpush2.msra.mxu0 0.0
      %1831 = vmatprep.subr.mxu0 0.0
      %1832 = vmatpush2.msra.mxu0 0.0
      %1833 = vmatprep.subr.mxu0 0.0
      %1834 = vmatpush2.msra.mxu0 0.0
      %1835 = vmatprep.subr.mxu0 0.0
      %1836 = vmatpush2.msra.mxu0 0.0
      %1837 = vmatprep.subr.mxu0 0.0
      %1838 = vmatpush2.msra.mxu0 0.0
      %1839 = vmatprep.subr.mxu0 0.0
      %1840 = vmatpush2.msra.mxu0 0.0
      %1841 = vmatprep.subr.mxu0 0.0
      %1842 = vmatpush2.msra.mxu0 0.0
      %1843 = vmatprep.subr.mxu0 0.0
      %1844 = vmatpush2.msra.mxu0 0.0
      %1845 = vmatprep.mubr.f32.mxu0 0.0
      %1846 = vmatmul.mubr.f32.gmra.mxu0 %v858
      %v1847 = vpop.f32.mrf.mxu0
      %v1848 = vadd.f32 %v1703, %v1847
      %v1849 = vpop.f32.mrf.mxu0
      %1850 = vmatprep.mubr.f32.mxu0 0.0
      %1851 = vmatmul.mubr.f32.gmra.mxu0 %v902
      %v1852 = vpop.f32.mrf.mxu0
      %v1853 = vadd.f32 %v1708, %v1852
      %v1854 = vpop.f32.mrf.mxu0
      %1855 = vmatprep.mubr.f32.mxu0 0.0
      %1856 = vmatmul.mubr.f32.gmra.mxu0 %v861
      %v1857 = vpop.f32.mrf.mxu0
      %v1858 = vadd.f32 %v1713, %v1857
      %v1859 = vpop.f32.mrf.mxu0
      %1860 = vmatprep.mubr.f32.mxu0 0.0
      %1861 = vmatmul.mubr.f32.gmra.mxu0 %v903
      %v1862 = vpop.f32.mrf.mxu0
      %v1863 = vadd.f32 %v1718, %v1862
      %v1864 = vpop.f32.mrf.mxu0
      %1865 = vmatprep.mubr.f32.mxu0 0.0
      %1866 = vmatmul.mubr.f32.gmra.mxu0 %v864
      %v1867 = vpop.f32.mrf.mxu0
      %v1868 = vadd.f32 %v1723, %v1867
      %v1869 = vpop.f32.mrf.mxu0
      %1870 = vmatprep.mubr.f32.mxu0 0.0
      %1871 = vmatmul.mubr.f32.gmra.mxu0 %v904
      %v1872 = vpop.f32.mrf.mxu0
      %v1873 = vadd.f32 %v1728, %v1872
      %v1874 = vpop.f32.mrf.mxu0
      %1875 = vmatprep.mubr.f32.mxu0 0.0
      %1876 = vmatmul.mubr.f32.gmra.mxu0 %v867
      %v1877 = vpop.f32.mrf.mxu0
      %v1878 = vadd.f32 %v1733, %v1877
      %v1879 = vpop.f32.mrf.mxu0
      %1880 = vmatprep.mubr.f32.mxu0 0.0
      %1881 = vmatmul.mubr.f32.gmra.mxu0 %v905
      %v1882 = vpop.f32.mrf.mxu0
      %v1883 = vadd.f32 %v1738, %v1882
      %v1884 = vpop.f32.mrf.mxu0
      %1885 = vmatprep.mubr.f32.mxu0 0.0
      %1886 = vmatmul.mubr.f32.gmra.mxu0 %v870
      %v1887 = vpop.f32.mrf.mxu0
      %v1888 = vadd.f32 %v1743, %v1887
      %v1889 = vpop.f32.mrf.mxu0
      %1890 = vmatprep.mubr.f32.mxu0 0.0
      %1891 = vmatmul.mubr.f32.gmra.mxu0 %v906
      %v1892 = vpop.f32.mrf.mxu0
      %v1893 = vadd.f32 %v1748, %v1892
      %v1894 = vpop.f32.mrf.mxu0
      %1895 = vmatprep.mubr.f32.mxu0 0.0
      %1896 = vmatmul.mubr.f32.gmra.mxu0 %v873
      %v1897 = vpop.f32.mrf.mxu0
      %v1898 = vadd.f32 %v1753, %v1897
      %v1899 = vpop.f32.mrf.mxu0
      %1900 = vmatprep.mubr.f32.mxu0 0.0
      %1901 = vmatmul.mubr.f32.gmra.mxu0 %v907
      %v1902 = vpop.f32.mrf.mxu0
      %v1903 = vadd.f32 %v1758, %v1902
      %v1904 = vpop.f32.mrf.mxu0
      %1905 = vmatprep.mubr.f32.mxu0 0.0
      %1906 = vmatmul.mubr.f32.gmra.mxu0 %v876
      %v1907 = vpop.f32.mrf.mxu0
      %v1908 = vadd.f32 %v1763, %v1907
      %v1909 = vpop.f32.mrf.mxu0
      %1910 = vmatprep.mubr.f32.mxu0 0.0
      %1911 = vmatmul.mubr.f32.gmra.mxu0 %v908
      %v1912 = vpop.f32.mrf.mxu0
      %v1913 = vadd.f32 %v1768, %v1912
      %v1914 = vpop.f32.mrf.mxu0
      %1915 = vmatprep.mubr.f32.mxu0 0.0
      %1916 = vmatmul.mubr.f32.gmra.mxu0 %v879
      %v1917 = vpop.f32.mrf.mxu0
      %v1918 = vadd.f32 %v1773, %v1917
      %v1919 = vpop.f32.mrf.mxu0
      %1920 = vmatprep.mubr.f32.mxu0 0.0
      %1921 = vmatmul.mubr.f32.gmra.mxu0 %v909
      %v1922 = vpop.f32.mrf.mxu0
      %v1923 = vadd.f32 %v1778, %v1922
      %v1924 = vpop.f32.mrf.mxu0
      %1925 = vdwg.mxu0
      %v1926 = vadd.f32 %v1509, %v1848
      %v1927 = vadd.f32 %v1514, %v1853
      %v1928 = vadd.f32 %v1519, %v1858
      %v1929 = vadd.f32 %v1524, %v1863
      %v1930 = vadd.f32 %v1529, %v1868
      %v1931 = vadd.f32 %v1534, %v1873
      %v1932 = vadd.f32 %v1539, %v1878
      %v1933 = vadd.f32 %v1544, %v1883
      %v1934 = vadd.f32 %v1549, %v1888
      %v1935 = vadd.f32 %v1554, %v1893
      %v1936 = vadd.f32 %v1559, %v1898
      %v1937 = vadd.f32 %v1564, %v1903
      %v1938 = vadd.f32 %v1569, %v1908
      %v1939 = vadd.f32 %v1574, %v1913
      %v1940 = vadd.f32 %v1579, %v1918
      %v1941 = vadd.f32 %v1584, %v1923
      %v1942 = vld [vmem:[%s6] sm:$0x1]
      %v1944 = vlaneseq
      %v1945 = vshrl.u32 %v1944, 7
      %v1946 = vsub.s32 0, %v1945
      %v1947 = vrot.slane %v1942, %v1946
      %v1949 = vadd.f32 %v1926, %v1947
      %v1950 = vadd.f32 %v1927, %v1947
      %v1951 = vadd.f32 %v1928, %v1947
      %v1952 = vadd.f32 %v1929, %v1947
      %v1953 = vadd.f32 %v1930, %v1947
      %v1954 = vadd.f32 %v1931, %v1947
      %v1955 = vadd.f32 %v1932, %v1947
      %v1956 = vadd.f32 %v1933, %v1947
      %v1957 = vadd.f32 %v1934, %v1947
      %v1958 = vadd.f32 %v1935, %v1947
      %v1959 = vadd.f32 %v1936, %v1947
      %v1960 = vadd.f32 %v1937, %v1947
      %v1961 = vadd.f32 %v1938, %v1947
      %v1962 = vadd.f32 %v1939, %v1947
      %v1963 = vadd.f32 %v1940, %v1947
      %v1964 = vadd.f32 %v1941, %v1947
      %vm1965 = vcmp.gt.f32.partialorder %v1949, 0.0
      %vm1966 = vcmp.gt.f32.partialorder %v1950, 0.0
      %vm1967 = vcmp.gt.f32.partialorder %v1951, 0.0
      %vm1968 = vcmp.gt.f32.partialorder %v1952, 0.0
      %vm1969 = vcmp.gt.f32.partialorder %v1953, 0.0
      %vm1970 = vcmp.gt.f32.partialorder %v1954, 0.0
      %vm1971 = vcmp.gt.f32.partialorder %v1955, 0.0
      %vm1972 = vcmp.gt.f32.partialorder %v1956, 0.0
      %vm1973 = vcmp.gt.f32.partialorder %v1957, 0.0
      %vm1974 = vcmp.gt.f32.partialorder %v1958, 0.0
      %vm1975 = vcmp.gt.f32.partialorder %v1959, 0.0
      %vm1976 = vcmp.gt.f32.partialorder %v1960, 0.0
      %vm1977 = vcmp.gt.f32.partialorder %v1961, 0.0
      %vm1978 = vcmp.gt.f32.partialorder %v1962, 0.0
      %vm1979 = vcmp.gt.f32.partialorder %v1963, 0.0
      %vm1980 = vcmp.gt.f32.partialorder %v1964, 0.0
      %v1981 = vmul.f32 %v1949, 0.1
      %v1982 = vmul.f32 %v1950, 0.1
      %v1983 = vmul.f32 %v1951, 0.1
      %v1984 = vmul.f32 %v1952, 0.1
      %v1985 = vmul.f32 %v1953, 0.1
      %v1986 = vmul.f32 %v1954, 0.1
      %v1987 = vmul.f32 %v1955, 0.1
      %v1988 = vmul.f32 %v1956, 0.1
      %v1989 = vmul.f32 %v1957, 0.1
      %v1990 = vmul.f32 %v1958, 0.1
      %v1991 = vmul.f32 %v1959, 0.1
      %v1992 = vmul.f32 %v1960, 0.1
      %v1993 = vmul.f32 %v1961, 0.1
      %v1994 = vmul.f32 %v1962, 0.1
      %v1995 = vmul.f32 %v1963, 0.1
      %v1996 = vmul.f32 %v1964, 0.1
      %v1997 = vsel %vm1965, %v1949, %v1981
      %v1998 = vsel %vm1966, %v1950, %v1982
      %v1999 = vsel %vm1967, %v1951, %v1983
      %v2000 = vsel %vm1968, %v1952, %v1984
      %v2001 = vsel %vm1969, %v1953, %v1985
      %v2002 = vsel %vm1970, %v1954, %v1986
      %v2003 = vsel %vm1971, %v1955, %v1987
      %v2004 = vsel %vm1972, %v1956, %v1988
      %v2005 = vsel %vm1973, %v1957, %v1989
      %v2006 = vsel %vm1974, %v1958, %v1990
      %v2007 = vsel %vm1975, %v1959, %v1991
      %v2008 = vsel %vm1976, %v1960, %v1992
      %v2009 = vsel %vm1977, %v1961, %v1993
      %v2010 = vsel %vm1978, %v1962, %v1994
      %v2011 = vsel %vm1979, %v1963, %v1995
      %v2012 = vsel %vm1980, %v1964, %v1996
      %v2013 = vld [vmem:[%s400] sm:$0xff]
      %v2014 = vld [vmem:[%s400 + $0x8] sm:$0xff]
      %v2015 = vld [vmem:[%s400 + $0x10] sm:$0xff]
      %v2016 = vld [vmem:[%s400 + $0x18] sm:$0xff]
      %v2017 = vld [vmem:[%s400 + $0x20] sm:$0xff]
      %v2018 = vld [vmem:[%s400 + $0x28] sm:$0xff]
      %v2019 = vld [vmem:[%s400 + $0x30] sm:$0xff]
      %v2020 = vld [vmem:[%s400 + $0x38] sm:$0xff]
      %v2021 = vld [vmem:[%s400 + $0x40] sm:$0xff]
      %v2022 = vld [vmem:[%s400 + $0x48] sm:$0xff]
      %v2023 = vld [vmem:[%s400 + $0x50] sm:$0xff]
      %v2024 = vld [vmem:[%s400 + $0x58] sm:$0xff]
      %v2025 = vld [vmem:[%s400 + $0x60] sm:$0xff]
      %v2026 = vld [vmem:[%s400 + $0x68] sm:$0xff]
      %v2027 = vld [vmem:[%s400 + $0x70] sm:$0xff]
      %v2028 = vld [vmem:[%s400 + $0x78] sm:$0xff]
      %v2029 = vadd.f32 %v2013, %v1997
      %v2030 = vadd.f32 %v2014, %v1998
      %v2031 = vadd.f32 %v2015, %v1999
      %v2032 = vadd.f32 %v2016, %v2000
      %v2033 = vadd.f32 %v2017, %v2001
      %v2034 = vadd.f32 %v2018, %v2002
      %v2035 = vadd.f32 %v2019, %v2003
      %v2036 = vadd.f32 %v2020, %v2004
      %v2037 = vadd.f32 %v2021, %v2005
      %v2038 = vadd.f32 %v2022, %v2006
      %v2039 = vadd.f32 %v2023, %v2007
      %v2040 = vadd.f32 %v2024, %v2008
      %v2041 = vadd.f32 %v2025, %v2009
      %v2042 = vadd.f32 %v2026, %v2010
      %v2043 = vadd.f32 %v2027, %v2011
      %v2044 = vadd.f32 %v2028, %v2012
      %2045 = vst [vmem:[%s445] sm:$0xff] %v2029
      %2046 = vst [vmem:[%s445 + $0x8] sm:$0xff] %v2030
      %2047 = vst [vmem:[%s445 + $0x10] sm:$0xff] %v2031
      %2048 = vst [vmem:[%s445 + $0x18] sm:$0xff] %v2032
      %2049 = vst [vmem:[%s445 + $0x20] sm:$0xff] %v2033
      %2050 = vst [vmem:[%s445 + $0x28] sm:$0xff] %v2034
      %2051 = vst [vmem:[%s445 + $0x30] sm:$0xff] %v2035
      %2052 = vst [vmem:[%s445 + $0x38] sm:$0xff] %v2036
      %2053 = vst [vmem:[%s445 + $0x40] sm:$0xff] %v2037
      %2054 = vst [vmem:[%s445 + $0x48] sm:$0xff] %v2038
      %2055 = vst [vmem:[%s445 + $0x50] sm:$0xff] %v2039
      %2056 = vst [vmem:[%s445 + $0x58] sm:$0xff] %v2040
      %2057 = vst [vmem:[%s445 + $0x60] sm:$0xff] %v2041
      %2058 = vst [vmem:[%s445 + $0x68] sm:$0xff] %v2042
      %2059 = vst [vmem:[%s445 + $0x70] sm:$0xff] %v2043
      %2060 = vst [vmem:[%s445 + $0x78] sm:$0xff] %v2044
      %s2061 = smul.u32 8, %s23
      %p2062 = scmp.lt.s32.totalorder %s22, 1
      %s2063 = scalar_select %p2062, %s22, 1
      %p2064 = scmp.lt.s32.totalorder %s2061, 15
      %s2065 = scalar_select %p2064, %s2061, 15
      %s2066 = smul.addr %s2065, 2
      %s2067 = smul.addr %s2063, 32
      %s2068 = sadd.s32 %s2066, %s2067
      %s2069 = smul.addr %s2068, 8
      %s2070 = scalar_lea.vmem %s7, %s2069
      // Predicated region
      $region57: #{residual_forward_nchw.1} parent=47 // pred_check
        %p2071 = pneg %p234
      $region58: #{residual_forward_nchw.1} parent=47 // pred_check_branch
        %2073 = sbr.rel (%p2071) target = $region60
      $region59: #{residual_forward_nchw.1} parent=47 // pred_region
        %s2074 = smul.u32 8, %s23
      $region60: #{residual_forward_nchw.1} parent=47 // pred_fallthru
        _
    $region48: #{residual_forward_nchw.1} parent=5 // pred_fallthru
      _
    %p2075 = scmp.le.s32.totalorder 2, %s13
    // Predicated region
    $region61: #{residual_forward_nchw.1} parent=5 // pred_check
      %p2076 = pneg %p2075
    $region62: #{residual_forward_nchw.1} parent=5 // pred_check_branch
      %2078 = sbr.rel (%p2076) target = $region64
    $region63: #{residual_forward_nchw.1} parent=5 // pred_region
      %s2079 = ssub.s32 %s13, 2
      // Predicated region
      $region65: #{residual_forward_nchw.1} parent=63 // pred_check
        %p2080 = pneg %p240
      $region66: #{residual_forward_nchw.1} parent=63 // pred_check_branch
        %2082 = sbr.rel (%p2080) target = $region68
      $region67: #{residual_forward_nchw.1} parent=63 // pred_region
        %s2083 = smul.u32 8, %s25
        %p2084 = scmp.lt.s32.totalorder %s24, 1
        %s2085 = scalar_select %p2084, %s24, 1
        %p2086 = scmp.lt.s32.totalorder %s2083, 15
        %s2087 = scalar_select %p2086, %s2083, 15
        %s2088 = smul.addr %s2087, 2
        %s2089 = smul.addr %s2085, 32
        %s2090 = sadd.s32 %s2088, %s2089
        %s2091 = smul.addr %s2090, 8
        %s2092 = scalar_lea.vmem %s7, %s2091
      $region68: #{residual_forward_nchw.1} parent=63 // pred_fallthru
        _
    $region64: #{residual_forward_nchw.1} parent=5 // pred_fallthru
      _
  $region6: #{residual_forward_nchw.1} parent=0 // loop_footer
    %s17 = sadd.s32 1, %s13
  $region7: #{residual_forward_nchw.1} parent=0 // loop_footer_branch
    %12 = sbr.rel target = $region3
  $region8: #{residual_forward_nchw.1} parent=0 // loop_exit
    _

</llo_original>
